<compile_context>
chip_gen: v7x
topology: tpu7x:2x2x1
jax: 0.10.0
libtpu: 0.0.40
codegen_flags: <defaults>
</compile_context>

<pallas_src>
import jax
import jax.numpy as jnp
from jax.experimental import pallas as pl
from jax.experimental.pallas import tpu as pltpu

# Small, module-consistent configuration (scaled-down hyper-parameters).
BATCH       = 8
IN_A        = 256          # input_embedding_A
IN_B        = 128          # input_embedding_B
IN_C        = 64           # input_embedding_C (audio)
IN_PAD      = 512          # stacked-projection K, zero-padded (256+128+64 -> 512)
SHARED      = 128          # shared_embedding
PROJ        = 128          # projection_embedding
P_H1        = 2 * SHARED   # pred hidden 1 (2 * shared_embedding)
P_H2        = SHARED       # pred hidden 2 (shared_embedding)
P_H3        = 512          # pred hidden 3 (hard-coded 512 in the module)
P_H4        = 128          # pred hidden 4 (hard-coded 128 in the module)
NUM_CLASSES = 5
OUT_PAD     = 128          # final linear zero-padded to a lane-dense width
BN_EPS      = 1e-5

B3P         = 32           # stacked rows: 3*BATCH=24, padded to a 16-multiple
PRED_ROWS   = 16           # pred-MLP LHS rows (BATCH=8 padded to 16)


def _build_vec_layout():
    """Static layout of the packed (1, N) bias buffer (all widths are 128k)."""
    entries = [
        ("bg1", PROJ), ("bg2", SHARED),
        ("bp1", P_H1), ("bp2", P_H2), ("bp3", P_H3), ("bp4", P_H4),
        ("bp5", OUT_PAD),
    ]
    layout, off = {}, 0
    for name, width in entries:
        layout[name] = (off, width)
        off += width
    return layout, off


_VEC_LAYOUT, _VEC_TOTAL = _build_vec_layout()


def _fused_kernel(x_ref, rowbn_ref, w_sh, wg1, wg2, wp1, wp2, wp3, wp4, wp5,
                  vec_ref, out_ref):
    relu = lambda x: jnp.maximum(x, 0.0)

    def mm(x_bf16, w_ref):
        # bf16 MXU inputs, f32 accumulation; pointwise work stays f32.
        return jnp.dot(x_bf16, w_ref[...], preferred_element_type=jnp.float32)

    def vec(name):
        off, width = _VEC_LAYOUT[name]
        return vec_ref[:, off:off + width]

    def softmax(x):
        m = jnp.max(x, axis=1, keepdims=True)
        e = jnp.exp(x - m)
        return e * pl.reciprocal(jnp.sum(e, axis=1, keepdims=True), approx=True)

    B = BATCH

    # --- Shared projections: ONE stacked matmul (rows: A | B | C | pad). ---
    # BN(ReLU(Linear(x))) with eval-mode BN folded to per-row-group scale/shift
    # applied AFTER the ReLU, matching the module.
    rowbn   = rowbn_ref[...]
    bias_r  = rowbn[:, 0:SHARED]
    scale_r = rowbn[:, SHARED:2 * SHARED]
    shift_r = rowbn[:, 2 * SHARED:3 * SHARED]
    s = relu(mm(x_ref[...].astype(jnp.bfloat16), w_sh) + bias_r)
    s = s * scale_r + shift_r                       # (32, SHARED); pad rows = 0

    # --- Collaborative gate 1: ONE matmul for all six unique products. ---
    p = mm(s.astype(jnp.bfloat16), wg1)             # (32, 2*PROJ) = [.. @wg1a | .. @wg1b]
    pa, pb = p[:, :PROJ], p[:, PROJ:]
    pa_A, pa_B, pa_C = pa[0:B], pa[B:2 * B], pa[2 * B:3 * B]
    pb_A, pb_B, pb_C = pb[0:B], pb[B:2 * B], pb[2 * B:3 * B]

    # Six attention logits stacked: (A,C),(A,B),(C,A),(C,B),(B,A),(B,C);
    # bg1 broadcast exactly once; ONE batched softmax over (48, PROJ).
    z = jnp.concatenate([pa_A + pb_C, pa_A + pb_B,
                         pa_C + pb_A, pa_C + pb_B,
                         pa_B + pb_A, pa_B + pb_C], axis=0) + vec("bg1")
    sz = softmax(z)

    # --- Collaborative gate 2: ONE matmul + ONE batched softmax (A | B | C | pad).
    g_in = jnp.concatenate([
        sz[0:B] + sz[B:2 * B],                       # aggregator(A; C, B)
        sz[4 * B:5 * B] + sz[5 * B:6 * B],           # aggregator(B; A, C)
        sz[2 * B:3 * B] + sz[3 * B:4 * B],           # aggregator(C; A, B)
        jnp.zeros((B3P - 3 * B, PROJ), jnp.float32),
    ], axis=0)
    g = softmax(mm(g_in.astype(jnp.bfloat16), wg2) + vec("bg2"))   # (32, SHARED)

    upd = s * g                                      # stacked updated features

    # --- Prediction MLP (concat order A, C, B; 16-row padded bf16 LHS). ---
    # TODO(synk): Dropout is stochastic in training; eval mode => identity.
    x_pred = jnp.concatenate([
        jnp.concatenate([upd[0:B], upd[2 * B:3 * B], upd[B:2 * B]], axis=1),
        jnp.zeros((PRED_ROWS - B, 3 * SHARED), jnp.float32),
    ], axis=0)
    h = relu(mm(x_pred.astype(jnp.bfloat16), wp1) + vec("bp1"))
    h = relu(mm(h.astype(jnp.bfloat16), wp2) + vec("bp2"))
    h = relu(mm(h.astype(jnp.bfloat16), wp3) + vec("bp3"))
    h = relu(mm(h.astype(jnp.bfloat16), wp4) + vec("bp4"))
    out = mm(h.astype(jnp.bfloat16), wp5) + vec("bp5")
    out_ref[...] = out[0:B].astype(out_ref.dtype)


def _build_stacked_input(uA, uB, uC):
    """Layout plumbing: stack the three modalities into one (32, 512) block
    (rows A | B | C | pad; per-modality column offsets, zero-padded)."""
    B = uA.shape[0]
    x = jnp.zeros((B3P, IN_PAD), jnp.float32)
    x = x.at[0:B, 0:IN_A].set(uA)
    x = x.at[B:2 * B, IN_A:IN_A + IN_B].set(uB)
    x = x.at[2 * B:3 * B, IN_A + IN_B:IN_A + IN_B + IN_C].set(uC)
    return x


def speaker_independent_triple_mode_without_context(uA, uB, uC, ops):
    x_stack = _build_stacked_input(uA, uB, uC)
    args = (x_stack,) + tuple(ops)
    in_specs = [pl.BlockSpec(memory_space=pltpu.MemorySpace.VMEM) for _ in args]
    padded = pl.pallas_call(
        _fused_kernel,
        out_shape=jax.ShapeDtypeStruct((uA.shape[0], OUT_PAD), jnp.float32),
        in_specs=in_specs,
        out_specs=pl.BlockSpec(memory_space=pltpu.MemorySpace.VMEM),
    )(*args)
    return padded[:, :NUM_CLASSES]


def init_raw_params(key):
    """Deterministic synthetic parameters (PyTorch-style uniform/BN init)."""
    def dense(k, fan_in, fan_out):
        kw, kb = jax.random.split(k)
        bound = 1.0 / (fan_in ** 0.5)
        w = jax.random.uniform(kw, (fan_in, fan_out), jnp.float32, -bound, bound)
        b = jax.random.uniform(kb, (1, fan_out), jnp.float32, -bound, bound)
        return w, b

    def bn(k, n):
        kg, kb, km, kv = jax.random.split(k, 4)
        gamma = jax.random.uniform(kg, (1, n), jnp.float32, 0.5, 1.5)
        beta = 0.1 * jax.random.normal(kb, (1, n), jnp.float32)
        mean = 0.1 * jax.random.normal(km, (1, n), jnp.float32)
        var = jax.random.uniform(kv, (1, n), jnp.float32, 0.5, 1.5)
        scale = gamma / jnp.sqrt(var + BN_EPS)
        shift = beta - mean * scale
        return scale, shift

    ks = jax.random.split(key, 17)
    p = {}
    p["wA"], p["bA"] = dense(ks[0], IN_A, SHARED)
    p["wB"], p["bB"] = dense(ks[1], IN_B, SHARED)
    p["wC"], p["bC"] = dense(ks[2], IN_C, SHARED)
    p["scA"], p["shA"] = bn(ks[3], SHARED)
    p["scB"], p["shB"] = bn(ks[4], SHARED)
    p["scC"], p["shC"] = bn(ks[5], SHARED)
    p["wg1"], p["bg1"] = dense(ks[6], 2 * SHARED, PROJ)
    p["wg2"], p["bg2"] = dense(ks[7], PROJ, SHARED)
    p["wp1"], p["bp1"] = dense(ks[8], 3 * SHARED, P_H1)
    p["sc1"], p["sh1"] = bn(ks[9], P_H1)
    p["wp2"], p["bp2"] = dense(ks[10], P_H1, P_H2)
    p["sc2"], p["sh2"] = bn(ks[11], P_H2)
    p["wp3"], p["bp3"] = dense(ks[12], P_H2, P_H3)
    p["sc3"], p["sh3"] = bn(ks[13], P_H3)
    p["wp4"], p["bp4"] = dense(ks[14], P_H3, P_H4)
    p["sc4"], p["sh4"] = bn(ks[15], P_H4)
    p["wp5"], p["bp5"] = dense(ks[16], P_H4, NUM_CLASSES)
    return p


def prepare_operands(p):
    """Host-side BN folding / weight stacking / vector packing / bf16 cast.

    Returns (kernel_ops, reference_params); both are built from the same folded
    f32 values so the reference validates the kernel's stacking/slicing.
    """
    def fold(w, b, scale, shift):  # (x@w + b)*scale + shift  ==  x@w' + b'
        return w * scale, b * scale + shift

    wp1, bp1 = fold(p["wp1"], p["bp1"], p["sc1"], p["sh1"])
    wp2, bp2 = fold(p["wp2"], p["bp2"], p["sc2"], p["sh2"])
    wp3, bp3 = fold(p["wp3"], p["bp3"], p["sc3"], p["sh3"])
    wp4, bp4 = fold(p["wp4"], p["bp4"], p["sc4"], p["sh4"])

    bf16 = lambda w: w.astype(jnp.bfloat16)

    # Stacked shared-projection weight: vstack(wA, wB, wC) zero-padded to 512 rows.
    w_sh = jnp.zeros((IN_PAD, SHARED), jnp.float32)
    w_sh = w_sh.at[0:IN_A].set(p["wA"])
    w_sh = w_sh.at[IN_A:IN_A + IN_B].set(p["wB"])
    w_sh = w_sh.at[IN_A + IN_B:IN_A + IN_B + IN_C].set(p["wC"])

    # Per-row-group [bias | BN scale | BN shift] for the stacked projection.
    row_bn = jnp.zeros((B3P, 3 * SHARED), jnp.float32)

    def set_group(buf, g, b, sc, sh):
        r0 = g * BATCH
        buf = buf.at[r0:r0 + BATCH, 0:SHARED].set(
            jnp.broadcast_to(b, (BATCH, SHARED)))
        buf = buf.at[r0:r0 + BATCH, SHARED:2 * SHARED].set(
            jnp.broadcast_to(sc, (BATCH, SHARED)))
        buf = buf.at[r0:r0 + BATCH, 2 * SHARED:3 * SHARED].set(
            jnp.broadcast_to(sh, (BATCH, SHARED)))
        return buf

    row_bn = set_group(row_bn, 0, p["bA"], p["scA"], p["shA"])
    row_bn = set_group(row_bn, 1, p["bB"], p["scB"], p["shB"])
    row_bn = set_group(row_bn, 2, p["bC"], p["scC"], p["shC"])

    # Gate-1 weight as a single (SHARED, 2*PROJ) block: [wg1a | wg1b].
    wg1_full = jnp.concatenate([p["wg1"][:SHARED], p["wg1"][SHARED:]], axis=1)

    # Lane-dense final layer: zero-pad (P_H4, NUM_CLASSES) -> (P_H4, OUT_PAD).
    wp5 = jnp.zeros((P_H4, OUT_PAD), jnp.float32).at[:, :NUM_CLASSES].set(p["wp5"])
    bp5 = jnp.zeros((1, OUT_PAD), jnp.float32).at[:, :NUM_CLASSES].set(p["bp5"])

    # Pack all remaining 1-row vectors (f32) into a single buffer.
    vec_vals = {"bg1": p["bg1"], "bg2": p["bg2"],
                "bp1": bp1, "bp2": bp2, "bp3": bp3, "bp4": bp4, "bp5": bp5}
    vecs = jnp.zeros((1, _VEC_TOTAL), jnp.float32)
    for name, (off, width) in _VEC_LAYOUT.items():
        vecs = vecs.at[:, off:off + width].set(vec_vals[name])

    ops = (row_bn,
           bf16(w_sh), bf16(wg1_full), bf16(p["wg2"]),
           bf16(wp1), bf16(wp2), bf16(wp3), bf16(wp4), bf16(wp5),
           vecs)

    ref_p = {
        "wA": bf16(p["wA"]), "wB": bf16(p["wB"]), "wC": bf16(p["wC"]),
        "bA": p["bA"], "bB": p["bB"], "bC": p["bC"],
        "scA": p["scA"], "shA": p["shA"],
        "scB": p["scB"], "shB": p["shB"],
        "scC": p["scC"], "shC": p["shC"],
        "wg1": bf16(p["wg1"]), "bg1": p["bg1"],
        "wg2": bf16(p["wg2"]), "bg2": p["bg2"],
        "wp1": bf16(wp1), "bp1": bp1,
        "wp2": bf16(wp2), "bp2": bp2,
        "wp3": bf16(wp3), "bp3": bp3,
        "wp4": bf16(wp4), "bp4": bp4,
        "wp5": bf16(p["wp5"]), "bp5": p["bp5"],
    }
    return ops, ref_p


def reference(uA, uB, uC, rp):
    """Pure-JAX reference mirroring the PyTorch forward (eval-mode BN/Dropout),
    written with the module's concat-based (un-stacked) structure, using the
    same bf16 weights / bf16 matmul inputs as the kernel so it validates the
    kernel's stacking, slicing and packing."""
    mm = lambda x, w: jnp.dot(x.astype(jnp.bfloat16), w,
                              preferred_element_type=jnp.float32)
    relu = lambda x: jnp.maximum(x, 0.0)
    sm = lambda x: jax.nn.softmax(x, axis=1)

    sA = relu(mm(uA, rp["wA"]) + rp["bA"]) * rp["scA"] + rp["shA"]
    sB = relu(mm(uB, rp["wB"]) + rp["bB"]) * rp["scB"] + rp["shB"]
    sC = relu(mm(uC, rp["wC"]) + rp["bC"]) * rp["scC"] + rp["shC"]

    att = lambda fA, fB: sm(mm(jnp.concatenate([fA, fB], axis=1), rp["wg1"])
                            + rp["bg1"])
    agg = lambda a, b, c: sm(mm(att(a, b) + att(a, c), rp["wg2"]) + rp["bg2"])

    upd_A = sA * agg(sA, sC, sB)
    upd_C = sC * agg(sC, sA, sB)
    upd_B = sB * agg(sB, sA, sC)

    x = jnp.concatenate([upd_A, upd_C, upd_B], axis=1)
    h = relu(mm(x, rp["wp1"]) + rp["bp1"])
    h = relu(mm(h, rp["wp2"]) + rp["bp2"])
    h = relu(mm(h, rp["wp3"]) + rp["bp3"])
    h = relu(mm(h, rp["wp4"]) + rp["bp4"])
    return mm(h, rp["wp5"]) + rp["bp5"]


if __name__ == "__main__":
    key = jax.random.PRNGKey(0)
    k_data, k_param = jax.random.split(key)
    kd = jax.random.split(k_data, 3)
    uA = jax.random.normal(kd[0], (BATCH, IN_A), jnp.float32)
    uB = jax.random.normal(kd[1], (BATCH, IN_B), jnp.float32)
    uC = jax.random.normal(kd[2], (BATCH, IN_C), jnp.float32)

    ops, ref_p = prepare_operands(init_raw_params(k_param))

    out = speaker_independent_triple_mode_without_context(uA, uB, uC, ops)
    out = jax.block_until_ready(out)

    ref = reference(uA, uB, uC, ref_p)
    if out.shape != (BATCH, NUM_CLASSES):
        raise AssertionError(f"bad output shape {out.shape}")
    if not bool(jnp.allclose(out, ref, atol=3e-2, rtol=3e-2)):
        raise AssertionError(
            f"kernel/reference mismatch: max abs diff = "
            f"{float(jnp.max(jnp.abs(out - ref)))}")
    print("KERNEL_OK")
</pallas_src>

<mosaic_0001>
module attributes {stable_mosaic.version = 11 : i64} {
  func.func @_fused_kernel(%arg0: memref<32x512xf32, #tpu.memory_space<vmem>>, %arg1: memref<32x384xf32, #tpu.memory_space<vmem>>, %arg2: memref<512x128xbf16, #tpu.memory_space<vmem>>, %arg3: memref<128x256xbf16, #tpu.memory_space<vmem>>, %arg4: memref<128x128xbf16, #tpu.memory_space<vmem>>, %arg5: memref<384x256xbf16, #tpu.memory_space<vmem>>, %arg6: memref<256x128xbf16, #tpu.memory_space<vmem>>, %arg7: memref<128x512xbf16, #tpu.memory_space<vmem>>, %arg8: memref<512x128xbf16, #tpu.memory_space<vmem>>, %arg9: memref<128x128xbf16, #tpu.memory_space<vmem>>, %arg10: memref<1x1408xf32, #tpu.memory_space<vmem>>, %arg11: memref<8x128xf32, #tpu.memory_space<vmem>>) attributes {dimension_semantics = [], scalar_prefetch = 0 : i64, scratch_operands = 0 : i64, tpu.core_type = #tpu.core_type<tc>} {
    %c0 = arith.constant 0 : index
    %c0_0 = arith.constant 0 : index
    %0 = vector.load %arg1[%c0, %c0_0] : memref<32x384xf32, #tpu.memory_space<vmem>>, vector<32x384xf32>
    %1 = vector.extract_strided_slice %0 {offsets = [0, 0], sizes = [32, 128], strides = [1, 1]} : vector<32x384xf32> to vector<32x128xf32>
    %2 = vector.extract_strided_slice %0 {offsets = [0, 128], sizes = [32, 128], strides = [1, 1]} : vector<32x384xf32> to vector<32x128xf32>
    %3 = vector.extract_strided_slice %0 {offsets = [0, 256], sizes = [32, 128], strides = [1, 1]} : vector<32x384xf32> to vector<32x128xf32>
    %c0_1 = arith.constant 0 : index
    %c0_2 = arith.constant 0 : index
    %4 = vector.load %arg0[%c0_1, %c0_2] : memref<32x512xf32, #tpu.memory_space<vmem>>, vector<32x512xf32>
    %5 = arith.truncf %4 : vector<32x512xf32> to vector<32x512xbf16>
    %c0_3 = arith.constant 0 : index
    %c0_4 = arith.constant 0 : index
    %6 = vector.load %arg2[%c0_3, %c0_4] : memref<512x128xbf16, #tpu.memory_space<vmem>>, vector<512x128xbf16>
    %cst = arith.constant dense<0.000000e+00> : vector<32x128xf32>
    %7 = tpu.matmul %5, %6, %cst {dimension_numbers = #tpu.dot_dimension_numbers<[1], [0], [0], [1], [0, 0, 1, 1], [], []>} : vector<32x512xbf16>, vector<512x128xbf16>, vector<32x128xf32> -> vector<32x128xf32>
    %8 = arith.addf %7, %1 : vector<32x128xf32>
    %cst_5 = arith.constant 0.000000e+00 : f32
    %9 = vector.broadcast %cst_5 : f32 to vector<32x128xf32>
    %10 = arith.maximumf %8, %9 : vector<32x128xf32>
    %11 = arith.mulf %10, %2 : vector<32x128xf32>
    %12 = arith.addf %11, %3 : vector<32x128xf32>
    %13 = arith.truncf %12 : vector<32x128xf32> to vector<32x128xbf16>
    %c0_6 = arith.constant 0 : index
    %c0_7 = arith.constant 0 : index
    %14 = vector.load %arg3[%c0_6, %c0_7] : memref<128x256xbf16, #tpu.memory_space<vmem>>, vector<128x256xbf16>
    %cst_8 = arith.constant dense<0.000000e+00> : vector<32x256xf32>
    %15 = tpu.matmul %13, %14, %cst_8 {dimension_numbers = #tpu.dot_dimension_numbers<[1], [0], [0], [1], [0, 0, 1, 1], [], []>} : vector<32x128xbf16>, vector<128x256xbf16>, vector<32x256xf32> -> vector<32x256xf32>
    %16 = vector.extract_strided_slice %15 {offsets = [0, 0], sizes = [32, 128], strides = [1, 1]} : vector<32x256xf32> to vector<32x128xf32>
    %17 = vector.extract_strided_slice %15 {offsets = [0, 128], sizes = [32, 128], strides = [1, 1]} : vector<32x256xf32> to vector<32x128xf32>
    %18 = vector.extract_strided_slice %16 {offsets = [0, 0], sizes = [8, 128], strides = [1, 1]} : vector<32x128xf32> to vector<8x128xf32>
    %19 = vector.extract_strided_slice %16 {offsets = [8, 0], sizes = [8, 128], strides = [1, 1]} : vector<32x128xf32> to vector<8x128xf32>
    %20 = vector.extract_strided_slice %16 {offsets = [16, 0], sizes = [8, 128], strides = [1, 1]} : vector<32x128xf32> to vector<8x128xf32>
    %21 = vector.extract_strided_slice %17 {offsets = [0, 0], sizes = [8, 128], strides = [1, 1]} : vector<32x128xf32> to vector<8x128xf32>
    %22 = vector.extract_strided_slice %17 {offsets = [8, 0], sizes = [8, 128], strides = [1, 1]} : vector<32x128xf32> to vector<8x128xf32>
    %23 = vector.extract_strided_slice %17 {offsets = [16, 0], sizes = [8, 128], strides = [1, 1]} : vector<32x128xf32> to vector<8x128xf32>
    %24 = arith.addf %18, %23 : vector<8x128xf32>
    %25 = arith.addf %18, %22 : vector<8x128xf32>
    %26 = arith.addf %20, %21 : vector<8x128xf32>
    %27 = arith.addf %20, %22 : vector<8x128xf32>
    %28 = arith.addf %19, %21 : vector<8x128xf32>
    %29 = arith.addf %19, %23 : vector<8x128xf32>
    %30 = tpu.concatenate %24, %25, %26, %27, %28, %29 in 0 : vector<8x128xf32>, vector<8x128xf32>, vector<8x128xf32>, vector<8x128xf32>, vector<8x128xf32>, vector<8x128xf32> -> vector<48x128xf32>
    %c0_9 = arith.constant 0 : index
    %c0_10 = arith.constant 0 : index
    %31 = vector.load %arg10[%c0_9, %c0_10] : memref<1x1408xf32, #tpu.memory_space<vmem>>, vector<1x128xf32>
    %32 = vector.broadcast %31 : vector<1x128xf32> to vector<48x128xf32>
    %33 = arith.addf %30, %32 : vector<48x128xf32>
    %cst_11 = arith.constant dense<0xFF800000> : vector<48xf32>
    %34 = vector.multi_reduction <maximumf>, %33, %cst_11 [1] : vector<48x128xf32> to vector<48xf32>
    %35 = vector.shape_cast %34 : vector<48xf32> to vector<48x1xf32>
    %36 = vector.broadcast %35 : vector<48x1xf32> to vector<48x128xf32>
    %37 = arith.subf %33, %36 : vector<48x128xf32>
    %38 = math.exp %37 : vector<48x128xf32>
    %cst_12 = arith.constant dense<0.000000e+00> : vector<48xf32>
    %39 = vector.multi_reduction <add>, %38, %cst_12 [1] : vector<48x128xf32> to vector<48xf32>
    %40 = vector.shape_cast %39 : vector<48xf32> to vector<48x1xf32>
    %41 = tpu.reciprocal %40 {approx = true} : vector<48x1xf32> -> vector<48x1xf32>
    %42 = vector.broadcast %41 : vector<48x1xf32> to vector<48x128xf32>
    %43 = arith.mulf %38, %42 : vector<48x128xf32>
    %44 = vector.extract_strided_slice %43 {offsets = [0, 0], sizes = [8, 128], strides = [1, 1]} : vector<48x128xf32> to vector<8x128xf32>
    %45 = vector.extract_strided_slice %43 {offsets = [8, 0], sizes = [8, 128], strides = [1, 1]} : vector<48x128xf32> to vector<8x128xf32>
    %46 = arith.addf %44, %45 : vector<8x128xf32>
    %47 = vector.extract_strided_slice %43 {offsets = [32, 0], sizes = [8, 128], strides = [1, 1]} : vector<48x128xf32> to vector<8x128xf32>
    %48 = vector.extract_strided_slice %43 {offsets = [40, 0], sizes = [8, 128], strides = [1, 1]} : vector<48x128xf32> to vector<8x128xf32>
    %49 = arith.addf %47, %48 : vector<8x128xf32>
    %50 = vector.extract_strided_slice %43 {offsets = [16, 0], sizes = [8, 128], strides = [1, 1]} : vector<48x128xf32> to vector<8x128xf32>
    %51 = vector.extract_strided_slice %43 {offsets = [24, 0], sizes = [8, 128], strides = [1, 1]} : vector<48x128xf32> to vector<8x128xf32>
    %52 = arith.addf %50, %51 : vector<8x128xf32>
    %cst_13 = arith.constant 0.000000e+00 : f32
    %53 = vector.broadcast %cst_13 : f32 to vector<8x128xf32>
    %54 = tpu.concatenate %46, %49, %52, %53 in 0 : vector<8x128xf32>, vector<8x128xf32>, vector<8x128xf32>, vector<8x128xf32> -> vector<32x128xf32>
    %55 = arith.truncf %54 : vector<32x128xf32> to vector<32x128xbf16>
    %c0_14 = arith.constant 0 : index
    %c0_15 = arith.constant 0 : index
    %56 = vector.load %arg4[%c0_14, %c0_15] : memref<128x128xbf16, #tpu.memory_space<vmem>>, vector<128x128xbf16>
    %cst_16 = arith.constant dense<0.000000e+00> : vector<32x128xf32>
    %57 = tpu.matmul %55, %56, %cst_16 {dimension_numbers = #tpu.dot_dimension_numbers<[1], [0], [0], [1], [0, 0, 1, 1], [], []>} : vector<32x128xbf16>, vector<128x128xbf16>, vector<32x128xf32> -> vector<32x128xf32>
    %c0_17 = arith.constant 0 : index
    %c128 = arith.constant 128 : index
    %58 = vector.load %arg10[%c0_17, %c128] : memref<1x1408xf32, #tpu.memory_space<vmem>>, vector<1x128xf32>
    %59 = vector.broadcast %58 : vector<1x128xf32> to vector<32x128xf32>
    %60 = arith.addf %57, %59 : vector<32x128xf32>
    %cst_18 = arith.constant dense<0xFF800000> : vector<32xf32>
    %61 = vector.multi_reduction <maximumf>, %60, %cst_18 [1] : vector<32x128xf32> to vector<32xf32>
    %62 = vector.shape_cast %61 : vector<32xf32> to vector<32x1xf32>
    %63 = vector.broadcast %62 : vector<32x1xf32> to vector<32x128xf32>
    %64 = arith.subf %60, %63 : vector<32x128xf32>
    %65 = math.exp %64 : vector<32x128xf32>
    %cst_19 = arith.constant dense<0.000000e+00> : vector<32xf32>
    %66 = vector.multi_reduction <add>, %65, %cst_19 [1] : vector<32x128xf32> to vector<32xf32>
    %67 = vector.shape_cast %66 : vector<32xf32> to vector<32x1xf32>
    %68 = tpu.reciprocal %67 {approx = true} : vector<32x1xf32> -> vector<32x1xf32>
    %69 = vector.broadcast %68 : vector<32x1xf32> to vector<32x128xf32>
    %70 = arith.mulf %65, %69 : vector<32x128xf32>
    %71 = arith.mulf %12, %70 : vector<32x128xf32>
    %72 = vector.extract_strided_slice %71 {offsets = [0, 0], sizes = [8, 128], strides = [1, 1]} : vector<32x128xf32> to vector<8x128xf32>
    %73 = vector.extract_strided_slice %71 {offsets = [16, 0], sizes = [8, 128], strides = [1, 1]} : vector<32x128xf32> to vector<8x128xf32>
    %74 = vector.extract_strided_slice %71 {offsets = [8, 0], sizes = [8, 128], strides = [1, 1]} : vector<32x128xf32> to vector<8x128xf32>
    %75 = tpu.concatenate %72, %73, %74 in 1 : vector<8x128xf32>, vector<8x128xf32>, vector<8x128xf32> -> vector<8x384xf32>
    %cst_20 = arith.constant 0.000000e+00 : f32
    %76 = vector.broadcast %cst_20 : f32 to vector<8x384xf32>
    %77 = tpu.concatenate %75, %76 in 0 : vector<8x384xf32>, vector<8x384xf32> -> vector<16x384xf32>
    %78 = arith.truncf %77 : vector<16x384xf32> to vector<16x384xbf16>
    %c0_21 = arith.constant 0 : index
    %c0_22 = arith.constant 0 : index
    %79 = vector.load %arg5[%c0_21, %c0_22] : memref<384x256xbf16, #tpu.memory_space<vmem>>, vector<384x256xbf16>
    %cst_23 = arith.constant dense<0.000000e+00> : vector<16x256xf32>
    %80 = tpu.matmul %78, %79, %cst_23 {dimension_numbers = #tpu.dot_dimension_numbers<[1], [0], [0], [1], [0, 0, 1, 1], [], []>} : vector<16x384xbf16>, vector<384x256xbf16>, vector<16x256xf32> -> vector<16x256xf32>
    %c0_24 = arith.constant 0 : index
    %c256 = arith.constant 256 : index
    %81 = vector.load %arg10[%c0_24, %c256] : memref<1x1408xf32, #tpu.memory_space<vmem>>, vector<1x256xf32>
    %82 = vector.broadcast %81 : vector<1x256xf32> to vector<16x256xf32>
    %83 = arith.addf %80, %82 : vector<16x256xf32>
    %cst_25 = arith.constant 0.000000e+00 : f32
    %84 = vector.broadcast %cst_25 : f32 to vector<16x256xf32>
    %85 = arith.maximumf %83, %84 : vector<16x256xf32>
    %86 = arith.truncf %85 : vector<16x256xf32> to vector<16x256xbf16>
    %c0_26 = arith.constant 0 : index
    %c0_27 = arith.constant 0 : index
    %87 = vector.load %arg6[%c0_26, %c0_27] : memref<256x128xbf16, #tpu.memory_space<vmem>>, vector<256x128xbf16>
    %cst_28 = arith.constant dense<0.000000e+00> : vector<16x128xf32>
    %88 = tpu.matmul %86, %87, %cst_28 {dimension_numbers = #tpu.dot_dimension_numbers<[1], [0], [0], [1], [0, 0, 1, 1], [], []>} : vector<16x256xbf16>, vector<256x128xbf16>, vector<16x128xf32> -> vector<16x128xf32>
    %c0_29 = arith.constant 0 : index
    %c512 = arith.constant 512 : index
    %89 = vector.load %arg10[%c0_29, %c512] : memref<1x1408xf32, #tpu.memory_space<vmem>>, vector<1x128xf32>
    %90 = vector.broadcast %89 : vector<1x128xf32> to vector<16x128xf32>
    %91 = arith.addf %88, %90 : vector<16x128xf32>
    %cst_30 = arith.constant 0.000000e+00 : f32
    %92 = vector.broadcast %cst_30 : f32 to vector<16x128xf32>
    %93 = arith.maximumf %91, %92 : vector<16x128xf32>
    %94 = arith.truncf %93 : vector<16x128xf32> to vector<16x128xbf16>
    %c0_31 = arith.constant 0 : index
    %c0_32 = arith.constant 0 : index
    %95 = vector.load %arg7[%c0_31, %c0_32] : memref<128x512xbf16, #tpu.memory_space<vmem>>, vector<128x512xbf16>
    %cst_33 = arith.constant dense<0.000000e+00> : vector<16x512xf32>
    %96 = tpu.matmul %94, %95, %cst_33 {dimension_numbers = #tpu.dot_dimension_numbers<[1], [0], [0], [1], [0, 0, 1, 1], [], []>} : vector<16x128xbf16>, vector<128x512xbf16>, vector<16x512xf32> -> vector<16x512xf32>
    %c0_34 = arith.constant 0 : index
    %c640 = arith.constant 640 : index
    %97 = vector.load %arg10[%c0_34, %c640] : memref<1x1408xf32, #tpu.memory_space<vmem>>, vector<1x512xf32>
    %98 = vector.broadcast %97 : vector<1x512xf32> to vector<16x512xf32>
    %99 = arith.addf %96, %98 : vector<16x512xf32>
    %cst_35 = arith.constant 0.000000e+00 : f32
    %100 = vector.broadcast %cst_35 : f32 to vector<16x512xf32>
    %101 = arith.maximumf %99, %100 : vector<16x512xf32>
    %102 = arith.truncf %101 : vector<16x512xf32> to vector<16x512xbf16>
    %c0_36 = arith.constant 0 : index
    %c0_37 = arith.constant 0 : index
    %103 = vector.load %arg8[%c0_36, %c0_37] : memref<512x128xbf16, #tpu.memory_space<vmem>>, vector<512x128xbf16>
    %cst_38 = arith.constant dense<0.000000e+00> : vector<16x128xf32>
    %104 = tpu.matmul %102, %103, %cst_38 {dimension_numbers = #tpu.dot_dimension_numbers<[1], [0], [0], [1], [0, 0, 1, 1], [], []>} : vector<16x512xbf16>, vector<512x128xbf16>, vector<16x128xf32> -> vector<16x128xf32>
    %c0_39 = arith.constant 0 : index
    %c1152 = arith.constant 1152 : index
    %105 = vector.load %arg10[%c0_39, %c1152] : memref<1x1408xf32, #tpu.memory_space<vmem>>, vector<1x128xf32>
    %106 = vector.broadcast %105 : vector<1x128xf32> to vector<16x128xf32>
    %107 = arith.addf %104, %106 : vector<16x128xf32>
    %cst_40 = arith.constant 0.000000e+00 : f32
    %108 = vector.broadcast %cst_40 : f32 to vector<16x128xf32>
    %109 = arith.maximumf %107, %108 : vector<16x128xf32>
    %110 = arith.truncf %109 : vector<16x128xf32> to vector<16x128xbf16>
    %c0_41 = arith.constant 0 : index
    %c0_42 = arith.constant 0 : index
    %111 = vector.load %arg9[%c0_41, %c0_42] : memref<128x128xbf16, #tpu.memory_space<vmem>>, vector<128x128xbf16>
    %cst_43 = arith.constant dense<0.000000e+00> : vector<16x128xf32>
    %112 = tpu.matmul %110, %111, %cst_43 {dimension_numbers = #tpu.dot_dimension_numbers<[1], [0], [0], [1], [0, 0, 1, 1], [], []>} : vector<16x128xbf16>, vector<128x128xbf16>, vector<16x128xf32> -> vector<16x128xf32>
    %c0_44 = arith.constant 0 : index
    %c1280 = arith.constant 1280 : index
    %113 = vector.load %arg10[%c0_44, %c1280] : memref<1x1408xf32, #tpu.memory_space<vmem>>, vector<1x128xf32>
    %114 = vector.broadcast %113 : vector<1x128xf32> to vector<16x128xf32>
    %115 = arith.addf %112, %114 : vector<16x128xf32>
    %116 = vector.extract_strided_slice %115 {offsets = [0, 0], sizes = [8, 128], strides = [1, 1]} : vector<16x128xf32> to vector<8x128xf32>
    %c0_45 = arith.constant 0 : index
    %c0_46 = arith.constant 0 : index
    %117 = vector.load %arg11[%c0_45, %c0_46] : memref<8x128xf32, #tpu.memory_space<vmem>>, vector<8x128xf32>
    tpu.vector_store %arg11[%c0_45, %c0_46], %116 {strides = array<i32>} : memref<8x128xf32, #tpu.memory_space<vmem>>, vector<8x128xf32>,
    return
  }
}

</mosaic_0001>

<llo_original>
// kernel: tpu_custom_call.1
$region0: #{tpu_custom_call.1}
  #allocation0 [shape = 'u32[]', space=smem, size = 0x4, offset = 0x4, fixed_abs, tag = 'smem constant byte address 0x4 - core index']
  #allocation1 [shape = 'u32[144,128]{1,0:T(1,128)}', space=vmem, size = 0x12000, scoped, tag = 'internal scratch']
  %s0 = inlined_call_operand.hbm [shape: f32[32,512], index: 0, kind: input, shape index: {}]
  %s1 = inlined_call_operand.hbm [shape: f32[32,384], index: 1, kind: input, shape index: {}]
  %s2 = inlined_call_operand.hbm [shape: bf16[512,128], index: 2, kind: input, shape index: {}]
  %s3 = inlined_call_operand.hbm [shape: bf16[128,256], index: 3, kind: input, shape index: {}]
  %s4 = inlined_call_operand.hbm [shape: bf16[128,128], index: 4, kind: input, shape index: {}]
  %s5 = inlined_call_operand.hbm [shape: bf16[384,256], index: 5, kind: input, shape index: {}]
  %s6 = inlined_call_operand.hbm [shape: bf16[256,128], index: 6, kind: input, shape index: {}]
  %s7 = inlined_call_operand.hbm [shape: bf16[128,512], index: 7, kind: input, shape index: {}]
  %s8 = inlined_call_operand.hbm [shape: bf16[512,128], index: 8, kind: input, shape index: {}]
  %s9 = inlined_call_operand.hbm [shape: bf16[128,128], index: 9, kind: input, shape index: {}]
  %s10 = inlined_call_operand.vmem [shape: f32[1,1408], index: 10, kind: input, shape index: {}]
  %s11 = inlined_call_operand.hbm [shape: f32[8,128], index: 11, kind: output, shape index: {}]
  %s12 = sld [smem:[#allocation0]]
  $region94: #{tpu_custom_call.1} parent=0
    _
  %s14 = ssub.s32 1, %s12
  %s15 = scalar_select 0, %s14, %s12
  $region1: #{tpu_custom_call.1} parent=0
    #allocation2 [shape = 'u8[65536]{0}', space=vmem, size = 0x10000, scoped, tag = 'input window, operand 0, single buffered']
    #allocation3 [shape = 's32[1]{0}', space=sflag, size = 0x4, scoped, tag = 'scoped memory for tpu_custom_call.1']
    #allocation4 [shape = 's32[1]{0}', space=sflag, size = 0x4, scoped, tag = 'scoped memory for tpu_custom_call.1']
    #allocation5 [shape = 'u8[49152]{0}', space=vmem, size = 0xc000, scoped, tag = 'input window, operand 1, single buffered']
    #allocation6 [shape = 's32[1]{0}', space=sflag, size = 0x4, scoped, tag = 'scoped memory for tpu_custom_call.1']
    #allocation7 [shape = 'u8[131072]{0}', space=vmem, size = 0x20000, scoped, tag = 'input window, operand 2, single buffered']
    #allocation8 [shape = 'u8[65536]{0}', space=vmem, size = 0x10000, scoped, tag = 'input window, operand 3, single buffered']
    #allocation9 [shape = 's32[1]{0}', space=sflag, size = 0x4, scoped, tag = 'scoped memory for tpu_custom_call.1']
    #allocation10 [shape = 'u8[32768]{0}', space=vmem, size = 0x8000, scoped, tag = 'input window, operand 4, single buffered']
    #allocation11 [shape = 'u8[196608]{0}', space=vmem, size = 0x30000, scoped, tag = 'input window, operand 5, single buffered']
    #allocation12 [shape = 's32[1]{0}', space=sflag, size = 0x4, scoped, tag = 'scoped memory for tpu_custom_call.1']
    #allocation13 [shape = 'u8[65536]{0}', space=vmem, size = 0x10000, scoped, tag = 'input window, operand 6, single buffered']
    #allocation14 [shape = 'u8[131072]{0}', space=vmem, size = 0x20000, scoped, tag = 'input window, operand 7, single buffered']
    #allocation15 [shape = 's32[1]{0}', space=sflag, size = 0x4, scoped, tag = 'scoped memory for tpu_custom_call.1']
    #allocation16 [shape = 'u8[131072]{0}', space=vmem, size = 0x20000, scoped, tag = 'input window, operand 8, single buffered']
    #allocation17 [shape = 'u8[32768]{0}', space=vmem, size = 0x8000, scoped, tag = 'input window, operand 9, single buffered']
    #allocation18 [shape = 's32[1]{0}', space=sflag, size = 0x4, scoped, tag = 'scoped memory for tpu_custom_call.1']
    #allocation19 [shape = 'u8[4096]{0}', space=vmem, size = 0x1000, scoped, tag = 'output window, operand 0, single buffered']
    %16 = vsyncpa [#allocation3], 0
    %17 = vsyncpa [#allocation6], 0
    %18 = vsyncpa [#allocation9], 0
    %19 = vsyncpa [#allocation12], 0
    %20 = vsyncpa [#allocation15], 0
    %21 = vsyncpa [#allocation18], 0
    %22 = vsyncpa [#allocation4], 0
    // Predicated region
    $region2: #{tpu_custom_call.1} parent=1 // pred_check
      _
    $region3: #{tpu_custom_call.1} parent=1 // pred_check_branch
      %24 = sbr.rel (0) target = $region5
    $region4: #{tpu_custom_call.1} parent=1 // pred_region
      %s26 = ssub.s32 2048, 2048
      %27 = vsyncadd [#allocation3], %s26
      %s28 = sshll.u32 [#allocation2], 4
      %s29 = int_to_ptr.vmem [resolvable:$true] %s28
      %34 = dma.hbm_to_vmem [thread:$0]  %s0, 2048, %s29, [#allocation3], 512, 512, 32
    $region5: #{tpu_custom_call.1} parent=1 // pred_fallthru
      _
    // Predicated region
    $region6: #{tpu_custom_call.1} parent=1 // pred_check
      _
    $region7: #{tpu_custom_call.1} parent=1 // pred_check_branch
      %36 = sbr.rel (0) target = $region9
    $region8: #{tpu_custom_call.1} parent=1 // pred_region
      %s38 = ssub.s32 1536, 1536
      %39 = vsyncadd [#allocation6], %s38
      %s40 = sshll.u32 [#allocation5], 4
      %s41 = int_to_ptr.vmem [resolvable:$true] %s40
      %46 = dma.hbm_to_vmem [thread:$0]  %s1, 1536, %s41, [#allocation6], 384, 384, 24
    $region9: #{tpu_custom_call.1} parent=1 // pred_fallthru
      _
    // Predicated region
    $region10: #{tpu_custom_call.1} parent=1 // pred_check
      _
    $region11: #{tpu_custom_call.1} parent=1 // pred_check_branch
      %48 = sbr.rel (0) target = $region13
    $region12: #{tpu_custom_call.1} parent=1 // pred_region
      %s50 = ssub.s32 4096, 4096
      %51 = vsyncadd [#allocation6], %s50
      %s52 = sshll.u32 [#allocation7], 4
      %s53 = int_to_ptr.vmem [resolvable:$true] %s52
      %58 = dma.hbm_to_vmem [thread:$0]  %s2, 4096, %s53, [#allocation6], 64, 64, 4
    $region13: #{tpu_custom_call.1} parent=1 // pred_fallthru
      _
    // Predicated region
    $region14: #{tpu_custom_call.1} parent=1 // pred_check
      _
    $region15: #{tpu_custom_call.1} parent=1 // pred_check_branch
      %60 = sbr.rel (0) target = $region17
    $region16: #{tpu_custom_call.1} parent=1 // pred_region
      %s62 = ssub.s32 2048, 2048
      %63 = vsyncadd [#allocation9], %s62
      %s64 = sshll.u32 [#allocation8], 4
      %s65 = int_to_ptr.vmem [resolvable:$true] %s64
      %70 = dma.hbm_to_vmem [thread:$0]  %s3, 2048, %s65, [#allocation9], 128, 128, 8
    $region17: #{tpu_custom_call.1} parent=1 // pred_fallthru
      _
    // Predicated region
    $region18: #{tpu_custom_call.1} parent=1 // pred_check
      _
    $region19: #{tpu_custom_call.1} parent=1 // pred_check_branch
      %72 = sbr.rel (0) target = $region21
    $region20: #{tpu_custom_call.1} parent=1 // pred_region
      %s74 = ssub.s32 1024, 1024
      %75 = vsyncadd [#allocation9], %s74
      %s76 = sshll.u32 [#allocation10], 4
      %s77 = int_to_ptr.vmem [resolvable:$true] %s76
      %82 = dma.hbm_to_vmem [thread:$0]  %s4, 1024, %s77, [#allocation9], 64, 64, 4
    $region21: #{tpu_custom_call.1} parent=1 // pred_fallthru
      _
    // Predicated region
    $region22: #{tpu_custom_call.1} parent=1 // pred_check
      _
    $region23: #{tpu_custom_call.1} parent=1 // pred_check_branch
      %84 = sbr.rel (0) target = $region25
    $region24: #{tpu_custom_call.1} parent=1 // pred_region
      %s86 = ssub.s32 6144, 6144
      %87 = vsyncadd [#allocation12], %s86
      %s88 = sshll.u32 [#allocation11], 4
      %s89 = int_to_ptr.vmem [resolvable:$true] %s88
      %94 = dma.hbm_to_vmem [thread:$0]  %s5, 6144, %s89, [#allocation12], 128, 128, 8
    $region25: #{tpu_custom_call.1} parent=1 // pred_fallthru
      _
    // Predicated region
    $region26: #{tpu_custom_call.1} parent=1 // pred_check
      _
    $region27: #{tpu_custom_call.1} parent=1 // pred_check_branch
      %96 = sbr.rel (0) target = $region29
    $region28: #{tpu_custom_call.1} parent=1 // pred_region
      %s98 = ssub.s32 2048, 2048
      %99 = vsyncadd [#allocation12], %s98
      %s100 = sshll.u32 [#allocation13], 4
      %s101 = int_to_ptr.vmem [resolvable:$true] %s100
      %106 = dma.hbm_to_vmem [thread:$0]  %s6, 2048, %s101, [#allocation12], 64, 64, 4
    $region29: #{tpu_custom_call.1} parent=1 // pred_fallthru
      _
    // Predicated region
    $region30: #{tpu_custom_call.1} parent=1 // pred_check
      _
    $region31: #{tpu_custom_call.1} parent=1 // pred_check_branch
      %108 = sbr.rel (0) target = $region33
    $region32: #{tpu_custom_call.1} parent=1 // pred_region
      %s110 = ssub.s32 4096, 4096
      %111 = vsyncadd [#allocation15], %s110
      %s112 = sshll.u32 [#allocation14], 4
      %s113 = int_to_ptr.vmem [resolvable:$true] %s112
      %118 = dma.hbm_to_vmem [thread:$0]  %s7, 4096, %s113, [#allocation15], 256, 256, 16
    $region33: #{tpu_custom_call.1} parent=1 // pred_fallthru
      _
    // Predicated region
    $region34: #{tpu_custom_call.1} parent=1 // pred_check
      _
    $region35: #{tpu_custom_call.1} parent=1 // pred_check_branch
      %120 = sbr.rel (0) target = $region37
    $region36: #{tpu_custom_call.1} parent=1 // pred_region
      %s122 = ssub.s32 4096, 4096
      %123 = vsyncadd [#allocation15], %s122
      %s124 = sshll.u32 [#allocation16], 4
      %s125 = int_to_ptr.vmem [resolvable:$true] %s124
      %130 = dma.hbm_to_vmem [thread:$0]  %s8, 4096, %s125, [#allocation15], 64, 64, 4
    $region37: #{tpu_custom_call.1} parent=1 // pred_fallthru
      _
    // Predicated region
    $region38: #{tpu_custom_call.1} parent=1 // pred_check
      _
    $region39: #{tpu_custom_call.1} parent=1 // pred_check_branch
      %132 = sbr.rel (0) target = $region41
    $region40: #{tpu_custom_call.1} parent=1 // pred_region
      %s134 = ssub.s32 1024, 1024
      %135 = vsyncadd [#allocation18], %s134
      %s136 = sshll.u32 [#allocation17], 4
      %s137 = int_to_ptr.vmem [resolvable:$true] %s136
      %142 = dma.hbm_to_vmem [thread:$0]  %s9, 1024, %s137, [#allocation18], 64, 64, 4
    $region41: #{tpu_custom_call.1} parent=1 // pred_fallthru
      _
    // Predicated region
    $region42: #{tpu_custom_call.1} parent=1 // pred_check
      _
    $region43: #{tpu_custom_call.1} parent=1 // pred_check_branch
      %144 = sbr.rel (0) target = $region45
    $region44: #{tpu_custom_call.1} parent=1 // pred_region
      _
    $region45: #{tpu_custom_call.1} parent=1 // pred_fallthru
      _
    // Predicated region
    $region46: #{tpu_custom_call.1} parent=1 // pred_check
      _
    $region47: #{tpu_custom_call.1} parent=1 // pred_check_branch
      %146 = sbr.rel (0) target = $region49
    $region48: #{tpu_custom_call.1} parent=1 // pred_region
      %147 = dma.done [#allocation3], 2048
    $region49: #{tpu_custom_call.1} parent=1 // pred_fallthru
      _
    // Predicated region
    $region50: #{tpu_custom_call.1} parent=1 // pred_check
      _
    $region51: #{tpu_custom_call.1} parent=1 // pred_check_branch
      %149 = sbr.rel (0) target = $region53
    $region52: #{tpu_custom_call.1} parent=1 // pred_region
      %150 = dma.done [#allocation6], 1536
    $region53: #{tpu_custom_call.1} parent=1 // pred_fallthru
      _
    // Predicated region
    $region54: #{tpu_custom_call.1} parent=1 // pred_check
      _
    $region55: #{tpu_custom_call.1} parent=1 // pred_check_branch
      %152 = sbr.rel (0) target = $region57
    $region56: #{tpu_custom_call.1} parent=1 // pred_region
      %153 = dma.done [#allocation6], 4096
    $region57: #{tpu_custom_call.1} parent=1 // pred_fallthru
      _
    // Predicated region
    $region58: #{tpu_custom_call.1} parent=1 // pred_check
      _
    $region59: #{tpu_custom_call.1} parent=1 // pred_check_branch
      %155 = sbr.rel (0) target = $region61
    $region60: #{tpu_custom_call.1} parent=1 // pred_region
      %156 = dma.done [#allocation9], 2048
    $region61: #{tpu_custom_call.1} parent=1 // pred_fallthru
      _
    // Predicated region
    $region62: #{tpu_custom_call.1} parent=1 // pred_check
      _
    $region63: #{tpu_custom_call.1} parent=1 // pred_check_branch
      %158 = sbr.rel (0) target = $region65
    $region64: #{tpu_custom_call.1} parent=1 // pred_region
      %159 = dma.done [#allocation9], 1024
    $region65: #{tpu_custom_call.1} parent=1 // pred_fallthru
      _
    // Predicated region
    $region66: #{tpu_custom_call.1} parent=1 // pred_check
      _
    $region67: #{tpu_custom_call.1} parent=1 // pred_check_branch
      %161 = sbr.rel (0) target = $region69
    $region68: #{tpu_custom_call.1} parent=1 // pred_region
      %162 = dma.done [#allocation12], 6144
    $region69: #{tpu_custom_call.1} parent=1 // pred_fallthru
      _
    // Predicated region
    $region70: #{tpu_custom_call.1} parent=1 // pred_check
      _
    $region71: #{tpu_custom_call.1} parent=1 // pred_check_branch
      %164 = sbr.rel (0) target = $region73
    $region72: #{tpu_custom_call.1} parent=1 // pred_region
      %165 = dma.done [#allocation12], 2048
    $region73: #{tpu_custom_call.1} parent=1 // pred_fallthru
      _
    // Predicated region
    $region74: #{tpu_custom_call.1} parent=1 // pred_check
      _
    $region75: #{tpu_custom_call.1} parent=1 // pred_check_branch
      %167 = sbr.rel (0) target = $region77
    $region76: #{tpu_custom_call.1} parent=1 // pred_region
      %168 = dma.done [#allocation15], 4096
    $region77: #{tpu_custom_call.1} parent=1 // pred_fallthru
      _
    // Predicated region
    $region78: #{tpu_custom_call.1} parent=1 // pred_check
      _
    $region79: #{tpu_custom_call.1} parent=1 // pred_check_branch
      %170 = sbr.rel (0) target = $region81
    $region80: #{tpu_custom_call.1} parent=1 // pred_region
      %171 = dma.done [#allocation15], 4096
    $region81: #{tpu_custom_call.1} parent=1 // pred_fallthru
      _
    // Predicated region
    $region82: #{tpu_custom_call.1} parent=1 // pred_check
      _
    $region83: #{tpu_custom_call.1} parent=1 // pred_check_branch
      %173 = sbr.rel (0) target = $region85
    $region84: #{tpu_custom_call.1} parent=1 // pred_region
      %174 = dma.done [#allocation18], 1024
    $region85: #{tpu_custom_call.1} parent=1 // pred_fallthru
      _
    %v176 = vld [vmem:[#allocation5] sm:$0xff]
    %v177 = vld [vmem:[#allocation5 + $0x8] sm:$0xff]
    %v178 = vld [vmem:[#allocation5 + $0x10] sm:$0xff]
    %v179 = vld [vmem:[#allocation5 + $0x18] sm:$0xff]
    %v180 = vld [vmem:[#allocation5 + $0x20] sm:$0xff]
    %v181 = vld [vmem:[#allocation5 + $0x28] sm:$0xff]
    %v182 = vld [vmem:[#allocation5 + $0x30] sm:$0xff]
    %v183 = vld [vmem:[#allocation5 + $0x38] sm:$0xff]
    %v184 = vld [vmem:[#allocation5 + $0x40] sm:$0xff]
    %v185 = vld [vmem:[#allocation5 + $0x48] sm:$0xff]
    %v186 = vld [vmem:[#allocation5 + $0x50] sm:$0xff]
    %v187 = vld [vmem:[#allocation5 + $0x58] sm:$0xff]
    %v188 = vld [vmem:[#allocation2] sm:$0xff]
    %v189 = vld [vmem:[#allocation2 + $0x8] sm:$0xff]
    %v190 = vld [vmem:[#allocation2 + $0x10] sm:$0xff]
    %v191 = vld [vmem:[#allocation2 + $0x18] sm:$0xff]
    %v192 = vld [vmem:[#allocation2 + $0x20] sm:$0xff]
    %v193 = vld [vmem:[#allocation2 + $0x28] sm:$0xff]
    %v194 = vld [vmem:[#allocation2 + $0x30] sm:$0xff]
    %v195 = vld [vmem:[#allocation2 + $0x38] sm:$0xff]
    %v196 = vld [vmem:[#allocation2 + $0x40] sm:$0xff]
    %v197 = vld [vmem:[#allocation2 + $0x48] sm:$0xff]
    %v198 = vld [vmem:[#allocation2 + $0x50] sm:$0xff]
    %v199 = vld [vmem:[#allocation2 + $0x58] sm:$0xff]
    %v200 = vld [vmem:[#allocation2 + $0x60] sm:$0xff]
    %v201 = vld [vmem:[#allocation2 + $0x68] sm:$0xff]
    %v202 = vld [vmem:[#allocation2 + $0x70] sm:$0xff]
    %v203 = vld [vmem:[#allocation2 + $0x78] sm:$0xff]
    %v204 = vpack.c.bf16 %v192, %v188
    %v205 = vpack.c.bf16 %v193, %v189
    %v206 = vpack.c.bf16 %v194, %v190
    %v207 = vpack.c.bf16 %v195, %v191
    %v208 = vpack.c.bf16 %v200, %v196
    %v209 = vpack.c.bf16 %v201, %v197
    %v210 = vpack.c.bf16 %v202, %v198
    %v211 = vpack.c.bf16 %v203, %v199
    %v212 = vld [vmem:[#allocation7] sm:$0xf]
    %v213 = vld [vmem:[#allocation7 + $0x4] sm:$0xf]
    %v214 = vld [vmem:[#allocation7 + $0x8] sm:$0xf]
    %v215 = vld [vmem:[#allocation7 + $0xc] sm:$0xf]
    %v216 = vld [vmem:[#allocation7 + $0x10] sm:$0xf]
    %v217 = vld [vmem:[#allocation7 + $0x14] sm:$0xf]
    %v218 = vld [vmem:[#allocation7 + $0x18] sm:$0xf]
    %v219 = vld [vmem:[#allocation7 + $0x1c] sm:$0xf]
    %v220 = vld [vmem:[#allocation7 + $0x20] sm:$0xf]
    %v221 = vld [vmem:[#allocation7 + $0x24] sm:$0xf]
    %v222 = vld [vmem:[#allocation7 + $0x28] sm:$0xf]
    %v223 = vld [vmem:[#allocation7 + $0x2c] sm:$0xf]
    %v224 = vld [vmem:[#allocation7 + $0x30] sm:$0xf]
    %v225 = vld [vmem:[#allocation7 + $0x34] sm:$0xf]
    %v226 = vld [vmem:[#allocation7 + $0x38] sm:$0xf]
    %v227 = vld [vmem:[#allocation7 + $0x3c] sm:$0xf]
    %v228 = vld [vmem:[#allocation7 + $0x40] sm:$0xf]
    %v229 = vld [vmem:[#allocation7 + $0x44] sm:$0xf]
    %v230 = vld [vmem:[#allocation7 + $0x48] sm:$0xf]
    %v231 = vld [vmem:[#allocation7 + $0x4c] sm:$0xf]
    %v232 = vld [vmem:[#allocation7 + $0x50] sm:$0xf]
    %v233 = vld [vmem:[#allocation7 + $0x54] sm:$0xf]
    %v234 = vld [vmem:[#allocation7 + $0x58] sm:$0xf]
    %v235 = vld [vmem:[#allocation7 + $0x5c] sm:$0xf]
    %v236 = vld [vmem:[#allocation7 + $0x60] sm:$0xf]
    %v237 = vld [vmem:[#allocation7 + $0x64] sm:$0xf]
    %v238 = vld [vmem:[#allocation7 + $0x68] sm:$0xf]
    %v239 = vld [vmem:[#allocation7 + $0x6c] sm:$0xf]
    %v240 = vld [vmem:[#allocation7 + $0x70] sm:$0xf]
    %v241 = vld [vmem:[#allocation7 + $0x74] sm:$0xf]
    %v242 = vld [vmem:[#allocation7 + $0x78] sm:$0xf]
    %v243 = vld [vmem:[#allocation7 + $0x7c] sm:$0xf]
    %v244 = vld [vmem:[#allocation7 + $0x80] sm:$0xf]
    %v245 = vld [vmem:[#allocation7 + $0x84] sm:$0xf]
    %v246 = vld [vmem:[#allocation7 + $0x88] sm:$0xf]
    %v247 = vld [vmem:[#allocation7 + $0x8c] sm:$0xf]
    %v248 = vld [vmem:[#allocation7 + $0x90] sm:$0xf]
    %v249 = vld [vmem:[#allocation7 + $0x94] sm:$0xf]
    %v250 = vld [vmem:[#allocation7 + $0x98] sm:$0xf]
    %v251 = vld [vmem:[#allocation7 + $0x9c] sm:$0xf]
    %v252 = vld [vmem:[#allocation7 + $0xa0] sm:$0xf]
    %v253 = vld [vmem:[#allocation7 + $0xa4] sm:$0xf]
    %v254 = vld [vmem:[#allocation7 + $0xa8] sm:$0xf]
    %v255 = vld [vmem:[#allocation7 + $0xac] sm:$0xf]
    %v256 = vld [vmem:[#allocation7 + $0xb0] sm:$0xf]
    %v257 = vld [vmem:[#allocation7 + $0xb4] sm:$0xf]
    %v258 = vld [vmem:[#allocation7 + $0xb8] sm:$0xf]
    %v259 = vld [vmem:[#allocation7 + $0xbc] sm:$0xf]
    %v260 = vld [vmem:[#allocation7 + $0xc0] sm:$0xf]
    %v261 = vld [vmem:[#allocation7 + $0xc4] sm:$0xf]
    %v262 = vld [vmem:[#allocation7 + $0xc8] sm:$0xf]
    %v263 = vld [vmem:[#allocation7 + $0xcc] sm:$0xf]
    %v264 = vld [vmem:[#allocation7 + $0xd0] sm:$0xf]
    %v265 = vld [vmem:[#allocation7 + $0xd4] sm:$0xf]
    %v266 = vld [vmem:[#allocation7 + $0xd8] sm:$0xf]
    %v267 = vld [vmem:[#allocation7 + $0xdc] sm:$0xf]
    %v268 = vld [vmem:[#allocation7 + $0xe0] sm:$0xf]
    %v269 = vld [vmem:[#allocation7 + $0xe4] sm:$0xf]
    %v270 = vld [vmem:[#allocation7 + $0xe8] sm:$0xf]
    %v271 = vld [vmem:[#allocation7 + $0xec] sm:$0xf]
    %v272 = vld [vmem:[#allocation7 + $0xf0] sm:$0xf]
    %v273 = vld [vmem:[#allocation7 + $0xf4] sm:$0xf]
    %v274 = vld [vmem:[#allocation7 + $0xf8] sm:$0xf]
    %v275 = vld [vmem:[#allocation7 + $0xfc] sm:$0xf]
    %v340 = vunpack.c.l.b16 %v212
    %v341 = vunpack.c.l.b16 %v213
    %v342 = vunpack.c.l.b16 %v214
    %v343 = vunpack.c.l.b16 %v215
    %v344 = vunpack.c.l.b16 %v216
    %v345 = vunpack.c.l.b16 %v217
    %v346 = vunpack.c.l.b16 %v218
    %v347 = vunpack.c.l.b16 %v219
    %v348 = vunpack.c.l.b16 %v220
    %v349 = vunpack.c.l.b16 %v221
    %v350 = vunpack.c.l.b16 %v222
    %v351 = vunpack.c.l.b16 %v223
    %v352 = vunpack.c.l.b16 %v224
    %v353 = vunpack.c.l.b16 %v225
    %v354 = vunpack.c.l.b16 %v226
    %v355 = vunpack.c.l.b16 %v227
    %v356 = vunpack.c.l.b16 %v228
    %v357 = vunpack.c.l.b16 %v229
    %v358 = vunpack.c.l.b16 %v230
    %v359 = vunpack.c.l.b16 %v231
    %v360 = vunpack.c.l.b16 %v232
    %v361 = vunpack.c.l.b16 %v233
    %v362 = vunpack.c.l.b16 %v234
    %v363 = vunpack.c.l.b16 %v235
    %v364 = vunpack.c.l.b16 %v236
    %v365 = vunpack.c.l.b16 %v237
    %v366 = vunpack.c.l.b16 %v238
    %v367 = vunpack.c.l.b16 %v239
    %v368 = vunpack.c.l.b16 %v240
    %v369 = vunpack.c.l.b16 %v241
    %v370 = vunpack.c.l.b16 %v242
    %v371 = vunpack.c.l.b16 %v243
    %v372 = vunpack.c.l.b16 %v244
    %v373 = vunpack.c.l.b16 %v245
    %v374 = vunpack.c.l.b16 %v246
    %v375 = vunpack.c.l.b16 %v247
    %v376 = vunpack.c.l.b16 %v248
    %v377 = vunpack.c.l.b16 %v249
    %v378 = vunpack.c.l.b16 %v250
    %v379 = vunpack.c.l.b16 %v251
    %v380 = vunpack.c.l.b16 %v252
    %v381 = vunpack.c.l.b16 %v253
    %v382 = vunpack.c.l.b16 %v254
    %v383 = vunpack.c.l.b16 %v255
    %v384 = vunpack.c.l.b16 %v256
    %v385 = vunpack.c.l.b16 %v257
    %v386 = vunpack.c.l.b16 %v258
    %v387 = vunpack.c.l.b16 %v259
    %v388 = vunpack.c.l.b16 %v260
    %v389 = vunpack.c.l.b16 %v261
    %v390 = vunpack.c.l.b16 %v262
    %v391 = vunpack.c.l.b16 %v263
    %v392 = vunpack.c.l.b16 %v264
    %v393 = vunpack.c.l.b16 %v265
    %v394 = vunpack.c.l.b16 %v266
    %v395 = vunpack.c.l.b16 %v267
    %v396 = vunpack.c.l.b16 %v268
    %v397 = vunpack.c.l.b16 %v269
    %v398 = vunpack.c.l.b16 %v270
    %v399 = vunpack.c.l.b16 %v271
    %v400 = vunpack.c.l.b16 %v272
    %v401 = vunpack.c.l.b16 %v273
    %v402 = vunpack.c.l.b16 %v274
    %v403 = vunpack.c.l.b16 %v275
    %v404 = vpack.c.b16 %v341, %v340
    %v405 = vpack.c.b16 %v343, %v342
    %v406 = vpack.c.b16 %v345, %v344
    %v407 = vpack.c.b16 %v347, %v346
    %v408 = vpack.c.b16 %v349, %v348
    %v409 = vpack.c.b16 %v351, %v350
    %v410 = vpack.c.b16 %v353, %v352
    %v411 = vpack.c.b16 %v355, %v354
    %v412 = vpack.c.b16 %v357, %v356
    %v413 = vpack.c.b16 %v359, %v358
    %v414 = vpack.c.b16 %v361, %v360
    %v415 = vpack.c.b16 %v363, %v362
    %v416 = vpack.c.b16 %v365, %v364
    %v417 = vpack.c.b16 %v367, %v366
    %v418 = vpack.c.b16 %v369, %v368
    %v419 = vpack.c.b16 %v371, %v370
    %v420 = vpack.c.b16 %v373, %v372
    %v421 = vpack.c.b16 %v375, %v374
    %v422 = vpack.c.b16 %v377, %v376
    %v423 = vpack.c.b16 %v379, %v378
    %v424 = vpack.c.b16 %v381, %v380
    %v425 = vpack.c.b16 %v383, %v382
    %v426 = vpack.c.b16 %v385, %v384
    %v427 = vpack.c.b16 %v387, %v386
    %v428 = vpack.c.b16 %v389, %v388
    %v429 = vpack.c.b16 %v391, %v390
    %v430 = vpack.c.b16 %v393, %v392
    %v431 = vpack.c.b16 %v395, %v394
    %v432 = vpack.c.b16 %v397, %v396
    %v433 = vpack.c.b16 %v399, %v398
    %v434 = vpack.c.b16 %v401, %v400
    %v435 = vpack.c.b16 %v403, %v402
    %468 = vmatprep.subr.bf16.mxu0 0
    %469 = vmatpush1.bf16.msra.mxu0 %v404
    %470 = vmatprep.subr.bf16.mxu0 0
    %471 = vmatpush1.bf16.msra.mxu0 %v405
    %472 = vmatprep.subr.bf16.mxu0 0
    %473 = vmatpush1.bf16.msra.mxu0 %v406
    %474 = vmatprep.subr.bf16.mxu0 0
    %475 = vmatpush1.bf16.msra.mxu0 %v407
    %476 = vmatprep.subr.bf16.mxu0 0
    %477 = vmatpush1.bf16.msra.mxu0 %v408
    %478 = vmatprep.subr.bf16.mxu0 0
    %479 = vmatpush1.bf16.msra.mxu0 %v409
    %480 = vmatprep.subr.bf16.mxu0 0
    %481 = vmatpush1.bf16.msra.mxu0 %v410
    %482 = vmatprep.subr.bf16.mxu0 0
    %483 = vmatpush1.bf16.msra.mxu0 %v411
    %484 = vmatprep.subr.bf16.mxu0 0
    %485 = vmatpush1.bf16.msra.mxu0 %v412
    %486 = vmatprep.subr.bf16.mxu0 0
    %487 = vmatpush1.bf16.msra.mxu0 %v413
    %488 = vmatprep.subr.bf16.mxu0 0
    %489 = vmatpush1.bf16.msra.mxu0 %v414
    %490 = vmatprep.subr.bf16.mxu0 0
    %491 = vmatpush1.bf16.msra.mxu0 %v415
    %492 = vmatprep.subr.bf16.mxu0 0
    %493 = vmatpush1.bf16.msra.mxu0 %v416
    %494 = vmatprep.subr.bf16.mxu0 0
    %495 = vmatpush1.bf16.msra.mxu0 %v417
    %496 = vmatprep.subr.bf16.mxu0 0
    %497 = vmatpush1.bf16.msra.mxu0 %v418
    %498 = vmatprep.subr.bf16.mxu0 0
    %499 = vmatpush1.bf16.msra.mxu0 %v419
    %500 = vmatprep.mubr.bf16.mxu0 %v205
    %501 = vmatmul.mubr.bf16.gmra.mrb[0].mxu0 %v204
    %v502 = vpop.f32.mrb[0].mxu0
    %v503 = vadd.f32 %v176, %v502
    %v504 = vpop.f32.mrb[0].mxu0
    %v505 = vpop.f32.mrb[0].mxu0
    %v506 = vadd.f32 %v179, %v505
    %v507 = vpop.f32.mrb[0].mxu0
    %508 = vmatprep.mubr.bf16.mxu0 %v209
    %509 = vmatmul.mubr.bf16.gmra.mrb[0].mxu0 %v208
    %v510 = vpop.f32.mrb[0].mxu0
    %v511 = vadd.f32 %v182, %v510
    %v512 = vpop.f32.mrb[0].mxu0
    %v513 = vpop.f32.mrb[0].mxu0
    %v514 = vadd.f32 %v185, %v513
    %v515 = vpop.f32.mrb[0].mxu0
    %516 = vdwg.mxu0
    %517 = vmatprep.subr.bf16.mxu0 0
    %518 = vmatpush1.bf16.msra.mxu0 %v420
    %519 = vmatprep.subr.bf16.mxu0 0
    %520 = vmatpush1.bf16.msra.mxu0 %v421
    %521 = vmatprep.subr.bf16.mxu0 0
    %522 = vmatpush1.bf16.msra.mxu0 %v422
    %523 = vmatprep.subr.bf16.mxu0 0
    %524 = vmatpush1.bf16.msra.mxu0 %v423
    %525 = vmatprep.subr.bf16.mxu0 0
    %526 = vmatpush1.bf16.msra.mxu0 %v424
    %527 = vmatprep.subr.bf16.mxu0 0
    %528 = vmatpush1.bf16.msra.mxu0 %v425
    %529 = vmatprep.subr.bf16.mxu0 0
    %530 = vmatpush1.bf16.msra.mxu0 %v426
    %531 = vmatprep.subr.bf16.mxu0 0
    %532 = vmatpush1.bf16.msra.mxu0 %v427
    %533 = vmatprep.subr.bf16.mxu0 0
    %534 = vmatpush1.bf16.msra.mxu0 %v428
    %535 = vmatprep.subr.bf16.mxu0 0
    %536 = vmatpush1.bf16.msra.mxu0 %v429
    %537 = vmatprep.subr.bf16.mxu0 0
    %538 = vmatpush1.bf16.msra.mxu0 %v430
    %539 = vmatprep.subr.bf16.mxu0 0
    %540 = vmatpush1.bf16.msra.mxu0 %v431
    %541 = vmatprep.subr.bf16.mxu0 0
    %542 = vmatpush1.bf16.msra.mxu0 %v432
    %543 = vmatprep.subr.bf16.mxu0 0
    %544 = vmatpush1.bf16.msra.mxu0 %v433
    %545 = vmatprep.subr.bf16.mxu0 0
    %546 = vmatpush1.bf16.msra.mxu0 %v434
    %547 = vmatprep.subr.bf16.mxu0 0
    %548 = vmatpush1.bf16.msra.mxu0 %v435
    %549 = vmatprep.mubr.bf16.mxu0 %v207
    %550 = vmatmul.mubr.bf16.gmra.mrb[0].mxu0 %v206
    %v551 = vpop.f32.mrb[0].mxu0
    %v552 = vadd.f32 %v503, %v551
    %v553 = vpop.f32.mrb[0].mxu0
    %v554 = vpop.f32.mrb[0].mxu0
    %v555 = vadd.f32 %v506, %v554
    %v556 = vpop.f32.mrb[0].mxu0
    %557 = vmatprep.mubr.bf16.mxu0 %v211
    %558 = vmatmul.mubr.bf16.gmra.mrb[0].mxu0 %v210
    %v559 = vpop.f32.mrb[0].mxu0
    %v560 = vadd.f32 %v511, %v559
    %v561 = vpop.f32.mrb[0].mxu0
    %v562 = vpop.f32.mrb[0].mxu0
    %v563 = vadd.f32 %v514, %v562
    %v564 = vpop.f32.mrb[0].mxu0
    %565 = vdwg.mxu0
    %v566 = vmax.f32 %v552, 0.0
    %v567 = vmax.f32 %v555, 0.0
    %v568 = vmax.f32 %v560, 0.0
    %v569 = vmax.f32 %v563, 0.0
    %v570 = vmul.f32 %v566, %v177
    %v571 = vmul.f32 %v567, %v180
    %v572 = vmul.f32 %v568, %v183
    %v573 = vmul.f32 %v569, %v186
    %v574 = vadd.f32 %v570, %v178
    %v575 = vadd.f32 %v571, %v181
    %v576 = vadd.f32 %v572, %v184
    %v577 = vadd.f32 %v573, %v187
    %v578 = vpack.c.bf16 %v575, %v574
    %v579 = vpack.c.bf16 %v577, %v576
    %v580 = vld [vmem:[#allocation8] sm:$0xff]
    %v581 = vld [vmem:[#allocation8 + $0x8] sm:$0xff]
    %v582 = vld [vmem:[#allocation8 + $0x10] sm:$0xff]
    %v583 = vld [vmem:[#allocation8 + $0x18] sm:$0xff]
    %v584 = vld [vmem:[#allocation8 + $0x20] sm:$0xff]
    %v585 = vld [vmem:[#allocation8 + $0x28] sm:$0xff]
    %v586 = vld [vmem:[#allocation8 + $0x30] sm:$0xff]
    %v587 = vld [vmem:[#allocation8 + $0x38] sm:$0xff]
    %v588 = vld [vmem:[#allocation8 + $0x40] sm:$0xff]
    %v589 = vld [vmem:[#allocation8 + $0x48] sm:$0xff]
    %v590 = vld [vmem:[#allocation8 + $0x50] sm:$0xff]
    %v591 = vld [vmem:[#allocation8 + $0x58] sm:$0xff]
    %v592 = vld [vmem:[#allocation8 + $0x60] sm:$0xff]
    %v593 = vld [vmem:[#allocation8 + $0x68] sm:$0xff]
    %v594 = vld [vmem:[#allocation8 + $0x70] sm:$0xff]
    %v595 = vld [vmem:[#allocation8 + $0x78] sm:$0xff]
    %v612 = vunpack.c.l.b16 %v580
    %v613 = vunpack.c.h.b16 %v580
    %v614 = vunpack.c.l.b16 %v581
    %v615 = vunpack.c.h.b16 %v581
    %v616 = vunpack.c.l.b16 %v582
    %v617 = vunpack.c.h.b16 %v582
    %v618 = vunpack.c.l.b16 %v583
    %v619 = vunpack.c.h.b16 %v583
    %v620 = vunpack.c.l.b16 %v584
    %v621 = vunpack.c.h.b16 %v584
    %v622 = vunpack.c.l.b16 %v585
    %v623 = vunpack.c.h.b16 %v585
    %v624 = vunpack.c.l.b16 %v586
    %v625 = vunpack.c.h.b16 %v586
    %v626 = vunpack.c.l.b16 %v587
    %v627 = vunpack.c.h.b16 %v587
    %v628 = vunpack.c.l.b16 %v588
    %v629 = vunpack.c.h.b16 %v588
    %v630 = vunpack.c.l.b16 %v589
    %v631 = vunpack.c.h.b16 %v589
    %v632 = vunpack.c.l.b16 %v590
    %v633 = vunpack.c.h.b16 %v590
    %v634 = vunpack.c.l.b16 %v591
    %v635 = vunpack.c.h.b16 %v591
    %v636 = vunpack.c.l.b16 %v592
    %v637 = vunpack.c.h.b16 %v592
    %v638 = vunpack.c.l.b16 %v593
    %v639 = vunpack.c.h.b16 %v593
    %v640 = vunpack.c.l.b16 %v594
    %v641 = vunpack.c.h.b16 %v594
    %v642 = vunpack.c.l.b16 %v595
    %v643 = vunpack.c.h.b16 %v595
    %v644 = vpack.c.b16 %v614, %v612
    %v645 = vpack.c.b16 %v615, %v613
    %v646 = vpack.c.b16 %v618, %v616
    %v647 = vpack.c.b16 %v619, %v617
    %v648 = vpack.c.b16 %v622, %v620
    %v649 = vpack.c.b16 %v623, %v621
    %v650 = vpack.c.b16 %v626, %v624
    %v651 = vpack.c.b16 %v627, %v625
    %v652 = vpack.c.b16 %v630, %v628
    %v653 = vpack.c.b16 %v631, %v629
    %v654 = vpack.c.b16 %v634, %v632
    %v655 = vpack.c.b16 %v635, %v633
    %v656 = vpack.c.b16 %v638, %v636
    %v657 = vpack.c.b16 %v639, %v637
    %v658 = vpack.c.b16 %v642, %v640
    %v659 = vpack.c.b16 %v643, %v641
    %676 = vmatprep.subr.bf16.mxu0 %v645
    %677 = vmatpush1.bf16.msra.mxu0 %v644
    %678 = vmatprep.subr.bf16.mxu0 %v647
    %679 = vmatpush1.bf16.msra.mxu0 %v646
    %680 = vmatprep.subr.bf16.mxu0 %v649
    %681 = vmatpush1.bf16.msra.mxu0 %v648
    %682 = vmatprep.subr.bf16.mxu0 %v651
    %683 = vmatpush1.bf16.msra.mxu0 %v650
    %684 = vmatprep.subr.bf16.mxu0 %v653
    %685 = vmatpush1.bf16.msra.mxu0 %v652
    %686 = vmatprep.subr.bf16.mxu0 %v655
    %687 = vmatpush1.bf16.msra.mxu0 %v654
    %688 = vmatprep.subr.bf16.mxu0 %v657
    %689 = vmatpush1.bf16.msra.mxu0 %v656
    %690 = vmatprep.subr.bf16.mxu0 %v659
    %691 = vmatpush1.bf16.msra.mxu0 %v658
    %692 = vmatprep.subr.bf16.mxu0 0
    %693 = vmatpush1.bf16.msra.mxu0 0
    %694 = vmatprep.subr.bf16.mxu0 0
    %695 = vmatpush1.bf16.msra.mxu0 0
    %696 = vmatprep.subr.bf16.mxu0 0
    %697 = vmatpush1.bf16.msra.mxu0 0
    %698 = vmatprep.subr.bf16.mxu0 0
    %699 = vmatpush1.bf16.msra.mxu0 0
    %700 = vmatprep.subr.bf16.mxu0 0
    %701 = vmatpush1.bf16.msra.mxu0 0
    %702 = vmatprep.subr.bf16.mxu0 0
    %703 = vmatpush1.bf16.msra.mxu0 0
    %704 = vmatprep.subr.bf16.mxu0 0
    %705 = vmatpush1.bf16.msra.mxu0 0
    %706 = vmatprep.subr.bf16.mxu0 0
    %707 = vmatpush1.bf16.msra.mxu0 0
    %708 = vmatprep.mubr.bf16.mxu0 0
    %709 = vmatmul.mubr.bf16.gmra.mrb[0].mxu0 %v578
    %v710 = vpop.f32.mrb[0].mxu0
    %v711 = vadd.f32 0.0, %v710
    %v712 = vpop.f32.mrb[0].mxu0
    %v713 = vadd.f32 0.0, %v712
    %v714 = vpop.f32.mrb[0].mxu0
    %v715 = vadd.f32 0.0, %v714
    %v716 = vpop.f32.mrb[0].mxu0
    %v717 = vadd.f32 0.0, %v716
    %718 = vmatprep.mubr.bf16.mxu0 0
    %719 = vmatmul.mubr.bf16.gmra.mrb[0].mxu0 %v579
    %v720 = vpop.f32.mrb[0].mxu0
    %v721 = vadd.f32 0.0, %v720
    %v722 = vpop.f32.mrb[0].mxu0
    %v723 = vadd.f32 0.0, %v722
    %v724 = vpop.f32.mrb[0].mxu0
    %v725 = vpop.f32.mrb[0].mxu0
    %726 = vdwg.mxu0
    %v727 = vadd.f32 %v711, %v723
    %v728 = vadd.f32 %v711, %v717
    %v729 = vadd.f32 %v721, %v713
    %v730 = vadd.f32 %v721, %v717
    %v731 = vadd.f32 %v715, %v713
    %v732 = vadd.f32 %v715, %v723
    %v733 = vld [vmem:[%s10] sm:$0x1]
    %v735 = vlaneseq
    %v736 = vshrl.u32 %v735, 7
    %v737 = vsub.s32 0, %v736
    %v738 = vrot.slane %v733, %v737
    %v740 = vadd.f32 %v727, %v738
    %v741 = vadd.f32 %v728, %v738
    %v742 = vadd.f32 %v729, %v738
    %v743 = vadd.f32 %v730, %v738
    %v744 = vadd.f32 %v731, %v738
    %v745 = vadd.f32 %v732, %v738
    %746 = vmax.xlane.f32.xlu0 %v740
    %v747 = vpop.xlane.xlu0 %746
    %748 = vmax.xlane.f32.xlu0 %v741
    %v749 = vpop.xlane.xlu0 %748
    %750 = vmax.xlane.f32.xlu0 %v742
    %v751 = vpop.xlane.xlu0 %750
    %752 = vmax.xlane.f32.xlu0 %v743
    %v753 = vpop.xlane.xlu0 %752
    %754 = vmax.xlane.f32.xlu0 %v744
    %v755 = vpop.xlane.xlu0 %754
    %756 = vmax.xlane.f32.xlu0 %v745
    %v757 = vpop.xlane.xlu0 %756
    %v758 = vsub.f32 %v740, %v747
    %v759 = vsub.f32 %v741, %v749
    %v760 = vsub.f32 %v742, %v751
    %v761 = vsub.f32 %v743, %v753
    %v762 = vsub.f32 %v744, %v755
    %v763 = vsub.f32 %v745, %v757
    %v764 = vmul.f32 %v758, 1.442695
    %v765 = vpow.pop %v764
    %v766 = vmul.f32 %v759, 1.442695
    %v767 = vpow.pop %v766
    %v768 = vmul.f32 %v760, 1.442695
    %v769 = vpow.pop %v768
    %v770 = vmul.f32 %v761, 1.442695
    %v771 = vpow.pop %v770
    %v772 = vmul.f32 %v762, 1.442695
    %v773 = vpow.pop %v772
    %v774 = vmul.f32 %v763, 1.442695
    %v775 = vpow.pop %v774
    %776 = vadd.xlane.f32.xlu0 %v765
    %v777 = vpop.xlane.xlu0 %776
    %778 = vadd.xlane.f32.xlu0 %v767
    %v779 = vpop.xlane.xlu0 %778
    %780 = vadd.xlane.f32.xlu0 %v769
    %v781 = vpop.xlane.xlu0 %780
    %782 = vadd.xlane.f32.xlu0 %v771
    %v783 = vpop.xlane.xlu0 %782
    %784 = vadd.xlane.f32.xlu0 %v773
    %v785 = vpop.xlane.xlu0 %784
    %786 = vadd.xlane.f32.xlu0 %v775
    %v787 = vpop.xlane.xlu0 %786
    %v788 = vrcp.pop %v777
    %v789 = vrcp.pop %v779
    %v790 = vrcp.pop %v781
    %v791 = vrcp.pop %v783
    %v792 = vrcp.pop %v785
    %v793 = vrcp.pop %v787
    %v794 = vmul.f32 %v765, %v788
    %v795 = vmul.f32 %v767, %v789
    %v796 = vmul.f32 %v769, %v790
    %v797 = vmul.f32 %v771, %v791
    %v798 = vmul.f32 %v773, %v792
    %v799 = vmul.f32 %v775, %v793
    %v800 = vadd.f32 %v794, %v795
    %v801 = vadd.f32 %v798, %v799
    %v802 = vadd.f32 %v796, %v797
    %v803 = vpack.c.bf16 %v801, %v800
    %v804 = vpack.c.bf16 0.0, %v802
    %v805 = vld [vmem:[#allocation10] sm:$0xf]
    %v806 = vld [vmem:[#allocation10 + $0x4] sm:$0xf]
    %v807 = vld [vmem:[#allocation10 + $0x8] sm:$0xf]
    %v808 = vld [vmem:[#allocation10 + $0xc] sm:$0xf]
    %v809 = vld [vmem:[#allocation10 + $0x10] sm:$0xf]
    %v810 = vld [vmem:[#allocation10 + $0x14] sm:$0xf]
    %v811 = vld [vmem:[#allocation10 + $0x18] sm:$0xf]
    %v812 = vld [vmem:[#allocation10 + $0x1c] sm:$0xf]
    %v813 = vld [vmem:[#allocation10 + $0x20] sm:$0xf]
    %v814 = vld [vmem:[#allocation10 + $0x24] sm:$0xf]
    %v815 = vld [vmem:[#allocation10 + $0x28] sm:$0xf]
    %v816 = vld [vmem:[#allocation10 + $0x2c] sm:$0xf]
    %v817 = vld [vmem:[#allocation10 + $0x30] sm:$0xf]
    %v818 = vld [vmem:[#allocation10 + $0x34] sm:$0xf]
    %v819 = vld [vmem:[#allocation10 + $0x38] sm:$0xf]
    %v820 = vld [vmem:[#allocation10 + $0x3c] sm:$0xf]
    %v821 = vld [vmem:[%s10 + $0x1] sm:$0x1]
    %v823 = vlaneseq
    %v824 = vshrl.u32 %v823, 7
    %v825 = vsub.s32 0, %v824
    %v826 = vrot.slane %v821, %v825
    %v844 = vunpack.c.l.b16 %v805
    %v845 = vunpack.c.l.b16 %v806
    %v846 = vunpack.c.l.b16 %v807
    %v847 = vunpack.c.l.b16 %v808
    %v848 = vunpack.c.l.b16 %v809
    %v849 = vunpack.c.l.b16 %v810
    %v850 = vunpack.c.l.b16 %v811
    %v851 = vunpack.c.l.b16 %v812
    %v852 = vunpack.c.l.b16 %v813
    %v853 = vunpack.c.l.b16 %v814
    %v854 = vunpack.c.l.b16 %v815
    %v855 = vunpack.c.l.b16 %v816
    %v856 = vunpack.c.l.b16 %v817
    %v857 = vunpack.c.l.b16 %v818
    %v858 = vunpack.c.l.b16 %v819
    %v859 = vunpack.c.l.b16 %v820
    %v860 = vpack.c.b16 %v845, %v844
    %v861 = vpack.c.b16 %v847, %v846
    %v862 = vpack.c.b16 %v849, %v848
    %v863 = vpack.c.b16 %v851, %v850
    %v864 = vpack.c.b16 %v853, %v852
    %v865 = vpack.c.b16 %v855, %v854
    %v866 = vpack.c.b16 %v857, %v856
    %v867 = vpack.c.b16 %v859, %v858
    %876 = vmatprep.subr.bf16.mxu0 0
    %877 = vmatpush1.bf16.msra.mxu0 %v860
    %878 = vmatprep.subr.bf16.mxu0 0
    %879 = vmatpush1.bf16.msra.mxu0 %v861
    %880 = vmatprep.subr.bf16.mxu0 0
    %881 = vmatpush1.bf16.msra.mxu0 %v862
    %882 = vmatprep.subr.bf16.mxu0 0
    %883 = vmatpush1.bf16.msra.mxu0 %v863
    %884 = vmatprep.subr.bf16.mxu0 0
    %885 = vmatpush1.bf16.msra.mxu0 %v864
    %886 = vmatprep.subr.bf16.mxu0 0
    %887 = vmatpush1.bf16.msra.mxu0 %v865
    %888 = vmatprep.subr.bf16.mxu0 0
    %889 = vmatpush1.bf16.msra.mxu0 %v866
    %890 = vmatprep.subr.bf16.mxu0 0
    %891 = vmatpush1.bf16.msra.mxu0 %v867
    %892 = vmatprep.subr.bf16.mxu0 0
    %893 = vmatpush1.bf16.msra.mxu0 0
    %894 = vmatprep.subr.bf16.mxu0 0
    %895 = vmatpush1.bf16.msra.mxu0 0
    %896 = vmatprep.subr.bf16.mxu0 0
    %897 = vmatpush1.bf16.msra.mxu0 0
    %898 = vmatprep.subr.bf16.mxu0 0
    %899 = vmatpush1.bf16.msra.mxu0 0
    %900 = vmatprep.subr.bf16.mxu0 0
    %901 = vmatpush1.bf16.msra.mxu0 0
    %902 = vmatprep.subr.bf16.mxu0 0
    %903 = vmatpush1.bf16.msra.mxu0 0
    %904 = vmatprep.subr.bf16.mxu0 0
    %905 = vmatpush1.bf16.msra.mxu0 0
    %906 = vmatprep.subr.bf16.mxu0 0
    %907 = vmatpush1.bf16.msra.mxu0 0
    %908 = vmatprep.mubr.bf16.mxu0 0
    %909 = vmatmul.mubr.bf16.gmra.mrb[0].mxu0 %v803
    %v910 = vpop.f32.mrb[0].mxu0
    %v911 = vadd.f32 %v826, %v910
    %v912 = vpop.f32.mrb[0].mxu0
    %v913 = vpop.f32.mrb[0].mxu0
    %v914 = vadd.f32 %v826, %v913
    %v915 = vpop.f32.mrb[0].mxu0
    %916 = vmatprep.mubr.bf16.mxu0 0
    %917 = vmatmul.mubr.bf16.gmra.mrb[0].mxu0 %v804
    %v918 = vpop.f32.mrb[0].mxu0
    %v919 = vadd.f32 %v826, %v918
    %v920 = vpop.f32.mrb[0].mxu0
    %v921 = vpop.f32.mrb[0].mxu0
    %v922 = vpop.f32.mrb[0].mxu0
    %923 = vdwg.mxu0
    %924 = vmax.xlane.f32.xlu0 %v911
    %v925 = vpop.xlane.xlu0 %924
    %926 = vmax.xlane.f32.xlu0 %v914
    %v927 = vpop.xlane.xlu0 %926
    %928 = vmax.xlane.f32.xlu0 %v919
    %v929 = vpop.xlane.xlu0 %928
    %v930 = vsub.f32 %v911, %v925
    %v931 = vsub.f32 %v914, %v927
    %v932 = vsub.f32 %v919, %v929
    %v933 = vmul.f32 %v930, 1.442695
    %v934 = vpow.pop %v933
    %v935 = vmul.f32 %v931, 1.442695
    %v936 = vpow.pop %v935
    %v937 = vmul.f32 %v932, 1.442695
    %v938 = vpow.pop %v937
    %939 = vadd.xlane.f32.xlu0 %v934
    %v940 = vpop.xlane.xlu0 %939
    %941 = vadd.xlane.f32.xlu0 %v936
    %v942 = vpop.xlane.xlu0 %941
    %943 = vadd.xlane.f32.xlu0 %v938
    %v944 = vpop.xlane.xlu0 %943
    %v945 = vrcp.pop %v940
    %v946 = vrcp.pop %v942
    %v947 = vrcp.pop %v944
    %v948 = vmul.f32 %v934, %v945
    %v949 = vmul.f32 %v936, %v946
    %v950 = vmul.f32 %v938, %v947
    %v951 = vmul.f32 %v574, %v948
    %v952 = vmul.f32 %v575, %v949
    %v953 = vmul.f32 %v576, %v950
    %v954 = vpack.c.bf16 0.0, %v951
    %v955 = vpack.c.bf16 0.0, %v953
    %v956 = vpack.c.bf16 0.0, %v952
    %v957 = vld [vmem:[#allocation11] sm:$0xff]
    %v958 = vld [vmem:[#allocation11 + $0x8] sm:$0xff]
    %v959 = vld [vmem:[#allocation11 + $0x10] sm:$0xff]
    %v960 = vld [vmem:[#allocation11 + $0x18] sm:$0xff]
    %v961 = vld [vmem:[#allocation11 + $0x20] sm:$0xff]
    %v962 = vld [vmem:[#allocation11 + $0x28] sm:$0xff]
    %v963 = vld [vmem:[#allocation11 + $0x30] sm:$0xff]
    %v964 = vld [vmem:[#allocation11 + $0x38] sm:$0xff]
    %v965 = vld [vmem:[#allocation11 + $0x40] sm:$0xff]
    %v966 = vld [vmem:[#allocation11 + $0x48] sm:$0xff]
    %v967 = vld [vmem:[#allocation11 + $0x50] sm:$0xff]
    %v968 = vld [vmem:[#allocation11 + $0x58] sm:$0xff]
    %v969 = vld [vmem:[#allocation11 + $0x60] sm:$0xff]
    %v970 = vld [vmem:[#allocation11 + $0x68] sm:$0xff]
    %v971 = vld [vmem:[#allocation11 + $0x70] sm:$0xff]
    %v972 = vld [vmem:[#allocation11 + $0x78] sm:$0xff]
    %v973 = vld [vmem:[#allocation11 + $0x80] sm:$0xff]
    %v974 = vld [vmem:[#allocation11 + $0x88] sm:$0xff]
    %v975 = vld [vmem:[#allocation11 + $0x90] sm:$0xff]
    %v976 = vld [vmem:[#allocation11 + $0x98] sm:$0xff]
    %v977 = vld [vmem:[#allocation11 + $0xa0] sm:$0xff]
    %v978 = vld [vmem:[#allocation11 + $0xa8] sm:$0xff]
    %v979 = vld [vmem:[#allocation11 + $0xb0] sm:$0xff]
    %v980 = vld [vmem:[#allocation11 + $0xb8] sm:$0xff]
    %v981 = vld [vmem:[#allocation11 + $0xc0] sm:$0xff]
    %v982 = vld [vmem:[#allocation11 + $0xc8] sm:$0xff]
    %v983 = vld [vmem:[#allocation11 + $0xd0] sm:$0xff]
    %v984 = vld [vmem:[#allocation11 + $0xd8] sm:$0xff]
    %v985 = vld [vmem:[#allocation11 + $0xe0] sm:$0xff]
    %v986 = vld [vmem:[#allocation11 + $0xe8] sm:$0xff]
    %v987 = vld [vmem:[#allocation11 + $0xf0] sm:$0xff]
    %v988 = vld [vmem:[#allocation11 + $0xf8] sm:$0xff]
    %v989 = vld [vmem:[#allocation11 + $0x100] sm:$0xff]
    %v990 = vld [vmem:[#allocation11 + $0x108] sm:$0xff]
    %v991 = vld [vmem:[#allocation11 + $0x110] sm:$0xff]
    %v992 = vld [vmem:[#allocation11 + $0x118] sm:$0xff]
    %v993 = vld [vmem:[#allocation11 + $0x120] sm:$0xff]
    %v994 = vld [vmem:[#allocation11 + $0x128] sm:$0xff]
    %v995 = vld [vmem:[#allocation11 + $0x130] sm:$0xff]
    %v996 = vld [vmem:[#allocation11 + $0x138] sm:$0xff]
    %v997 = vld [vmem:[#allocation11 + $0x140] sm:$0xff]
    %v998 = vld [vmem:[#allocation11 + $0x148] sm:$0xff]
    %v999 = vld [vmem:[#allocation11 + $0x150] sm:$0xff]
    %v1000 = vld [vmem:[#allocation11 + $0x158] sm:$0xff]
    %v1001 = vld [vmem:[#allocation11 + $0x160] sm:$0xff]
    %v1002 = vld [vmem:[#allocation11 + $0x168] sm:$0xff]
    %v1003 = vld [vmem:[#allocation11 + $0x170] sm:$0xff]
    %v1004 = vld [vmem:[#allocation11 + $0x178] sm:$0xff]
    %v1005 = vld [vmem:[%s10 + $0x2] sm:$0x3]
    %v1007 = vlaneseq
    %v1008 = vshrl.u32 %v1007, 7
    %v1009 = vsub.s32 0, %v1008
    %v1010 = vrot.slane %v1005, %v1009
    %v1011 = vlaneseq
    %v1012 = vshrl.u32 %v1011, 7
    %v1013 = vsub.s32 1, %v1012
    %v1014 = vrot.slane %v1005, %v1013
    %v1065 = vunpack.c.l.b16 %v957
    %v1066 = vunpack.c.h.b16 %v957
    %v1067 = vunpack.c.l.b16 %v958
    %v1068 = vunpack.c.h.b16 %v958
    %v1069 = vunpack.c.l.b16 %v959
    %v1070 = vunpack.c.h.b16 %v959
    %v1071 = vunpack.c.l.b16 %v960
    %v1072 = vunpack.c.h.b16 %v960
    %v1073 = vunpack.c.l.b16 %v961
    %v1074 = vunpack.c.h.b16 %v961
    %v1075 = vunpack.c.l.b16 %v962
    %v1076 = vunpack.c.h.b16 %v962
    %v1077 = vunpack.c.l.b16 %v963
    %v1078 = vunpack.c.h.b16 %v963
    %v1079 = vunpack.c.l.b16 %v964
    %v1080 = vunpack.c.h.b16 %v964
    %v1081 = vunpack.c.l.b16 %v965
    %v1082 = vunpack.c.h.b16 %v965
    %v1083 = vunpack.c.l.b16 %v966
    %v1084 = vunpack.c.h.b16 %v966
    %v1085 = vunpack.c.l.b16 %v967
    %v1086 = vunpack.c.h.b16 %v967
    %v1087 = vunpack.c.l.b16 %v968
    %v1088 = vunpack.c.h.b16 %v968
    %v1089 = vunpack.c.l.b16 %v969
    %v1090 = vunpack.c.h.b16 %v969
    %v1091 = vunpack.c.l.b16 %v970
    %v1092 = vunpack.c.h.b16 %v970
    %v1093 = vunpack.c.l.b16 %v971
    %v1094 = vunpack.c.h.b16 %v971
    %v1095 = vunpack.c.l.b16 %v972
    %v1096 = vunpack.c.h.b16 %v972
    %v1097 = vunpack.c.l.b16 %v973
    %v1098 = vunpack.c.h.b16 %v973
    %v1099 = vunpack.c.l.b16 %v974
    %v1100 = vunpack.c.h.b16 %v974
    %v1101 = vunpack.c.l.b16 %v975
    %v1102 = vunpack.c.h.b16 %v975
    %v1103 = vunpack.c.l.b16 %v976
    %v1104 = vunpack.c.h.b16 %v976
    %v1105 = vunpack.c.l.b16 %v977
    %v1106 = vunpack.c.h.b16 %v977
    %v1107 = vunpack.c.l.b16 %v978
    %v1108 = vunpack.c.h.b16 %v978
    %v1109 = vunpack.c.l.b16 %v979
    %v1110 = vunpack.c.h.b16 %v979
    %v1111 = vunpack.c.l.b16 %v980
    %v1112 = vunpack.c.h.b16 %v980
    %v1113 = vunpack.c.l.b16 %v981
    %v1114 = vunpack.c.h.b16 %v981
    %v1115 = vunpack.c.l.b16 %v982
    %v1116 = vunpack.c.h.b16 %v982
    %v1117 = vunpack.c.l.b16 %v983
    %v1118 = vunpack.c.h.b16 %v983
    %v1119 = vunpack.c.l.b16 %v984
    %v1120 = vunpack.c.h.b16 %v984
    %v1121 = vunpack.c.l.b16 %v985
    %v1122 = vunpack.c.h.b16 %v985
    %v1123 = vunpack.c.l.b16 %v986
    %v1124 = vunpack.c.h.b16 %v986
    %v1125 = vunpack.c.l.b16 %v987
    %v1126 = vunpack.c.h.b16 %v987
    %v1127 = vunpack.c.l.b16 %v988
    %v1128 = vunpack.c.h.b16 %v988
    %v1129 = vunpack.c.l.b16 %v989
    %v1130 = vunpack.c.h.b16 %v989
    %v1131 = vunpack.c.l.b16 %v990
    %v1132 = vunpack.c.h.b16 %v990
    %v1133 = vunpack.c.l.b16 %v991
    %v1134 = vunpack.c.h.b16 %v991
    %v1135 = vunpack.c.l.b16 %v992
    %v1136 = vunpack.c.h.b16 %v992
    %v1137 = vunpack.c.l.b16 %v993
    %v1138 = vunpack.c.h.b16 %v993
    %v1139 = vunpack.c.l.b16 %v994
    %v1140 = vunpack.c.h.b16 %v994
    %v1141 = vunpack.c.l.b16 %v995
    %v1142 = vunpack.c.h.b16 %v995
    %v1143 = vunpack.c.l.b16 %v996
    %v1144 = vunpack.c.h.b16 %v996
    %v1145 = vunpack.c.l.b16 %v997
    %v1146 = vunpack.c.h.b16 %v997
    %v1147 = vunpack.c.l.b16 %v998
    %v1148 = vunpack.c.h.b16 %v998
    %v1149 = vunpack.c.l.b16 %v999
    %v1150 = vunpack.c.h.b16 %v999
    %v1151 = vunpack.c.l.b16 %v1000
    %v1152 = vunpack.c.h.b16 %v1000
    %v1153 = vunpack.c.l.b16 %v1001
    %v1154 = vunpack.c.h.b16 %v1001
    %v1155 = vunpack.c.l.b16 %v1002
    %v1156 = vunpack.c.h.b16 %v1002
    %v1157 = vunpack.c.l.b16 %v1003
    %v1158 = vunpack.c.h.b16 %v1003
    %v1159 = vunpack.c.l.b16 %v1004
    %v1160 = vunpack.c.h.b16 %v1004
    %v1161 = vpack.c.b16 %v1067, %v1065
    %v1162 = vpack.c.b16 %v1068, %v1066
    %v1163 = vpack.c.b16 %v1071, %v1069
    %v1164 = vpack.c.b16 %v1072, %v1070
    %v1165 = vpack.c.b16 %v1075, %v1073
    %v1166 = vpack.c.b16 %v1076, %v1074
    %v1167 = vpack.c.b16 %v1079, %v1077
    %v1168 = vpack.c.b16 %v1080, %v1078
    %v1169 = vpack.c.b16 %v1083, %v1081
    %v1170 = vpack.c.b16 %v1084, %v1082
    %v1171 = vpack.c.b16 %v1087, %v1085
    %v1172 = vpack.c.b16 %v1088, %v1086
    %v1173 = vpack.c.b16 %v1091, %v1089
    %v1174 = vpack.c.b16 %v1092, %v1090
    %v1175 = vpack.c.b16 %v1095, %v1093
    %v1176 = vpack.c.b16 %v1096, %v1094
    %v1177 = vpack.c.b16 %v1099, %v1097
    %v1178 = vpack.c.b16 %v1100, %v1098
    %v1179 = vpack.c.b16 %v1103, %v1101
    %v1180 = vpack.c.b16 %v1104, %v1102
    %v1181 = vpack.c.b16 %v1107, %v1105
    %v1182 = vpack.c.b16 %v1108, %v1106
    %v1183 = vpack.c.b16 %v1111, %v1109
    %v1184 = vpack.c.b16 %v1112, %v1110
    %v1185 = vpack.c.b16 %v1115, %v1113
    %v1186 = vpack.c.b16 %v1116, %v1114
    %v1187 = vpack.c.b16 %v1119, %v1117
    %v1188 = vpack.c.b16 %v1120, %v1118
    %v1189 = vpack.c.b16 %v1123, %v1121
    %v1190 = vpack.c.b16 %v1124, %v1122
    %v1191 = vpack.c.b16 %v1127, %v1125
    %v1192 = vpack.c.b16 %v1128, %v1126
    %v1193 = vpack.c.b16 %v1131, %v1129
    %v1194 = vpack.c.b16 %v1132, %v1130
    %v1195 = vpack.c.b16 %v1135, %v1133
    %v1196 = vpack.c.b16 %v1136, %v1134
    %v1197 = vpack.c.b16 %v1139, %v1137
    %v1198 = vpack.c.b16 %v1140, %v1138
    %v1199 = vpack.c.b16 %v1143, %v1141
    %v1200 = vpack.c.b16 %v1144, %v1142
    %v1201 = vpack.c.b16 %v1147, %v1145
    %v1202 = vpack.c.b16 %v1148, %v1146
    %v1203 = vpack.c.b16 %v1151, %v1149
    %v1204 = vpack.c.b16 %v1152, %v1150
    %v1205 = vpack.c.b16 %v1155, %v1153
    %v1206 = vpack.c.b16 %v1156, %v1154
    %v1207 = vpack.c.b16 %v1159, %v1157
    %v1208 = vpack.c.b16 %v1160, %v1158
    %1257 = vmatprep.subr.bf16.mxu0 %v1162
    %1258 = vmatpush1.bf16.msra.mxu0 %v1161
    %1259 = vmatprep.subr.bf16.mxu0 %v1164
    %1260 = vmatpush1.bf16.msra.mxu0 %v1163
    %1261 = vmatprep.subr.bf16.mxu0 %v1166
    %1262 = vmatpush1.bf16.msra.mxu0 %v1165
    %1263 = vmatprep.subr.bf16.mxu0 %v1168
    %1264 = vmatpush1.bf16.msra.mxu0 %v1167
    %1265 = vmatprep.subr.bf16.mxu0 %v1170
    %1266 = vmatpush1.bf16.msra.mxu0 %v1169
    %1267 = vmatprep.subr.bf16.mxu0 %v1172
    %1268 = vmatpush1.bf16.msra.mxu0 %v1171
    %1269 = vmatprep.subr.bf16.mxu0 %v1174
    %1270 = vmatpush1.bf16.msra.mxu0 %v1173
    %1271 = vmatprep.subr.bf16.mxu0 %v1176
    %1272 = vmatpush1.bf16.msra.mxu0 %v1175
    %1273 = vmatprep.subr.bf16.mxu0 %v1178
    %1274 = vmatpush1.bf16.msra.mxu0 %v1177
    %1275 = vmatprep.subr.bf16.mxu0 %v1180
    %1276 = vmatpush1.bf16.msra.mxu0 %v1179
    %1277 = vmatprep.subr.bf16.mxu0 %v1182
    %1278 = vmatpush1.bf16.msra.mxu0 %v1181
    %1279 = vmatprep.subr.bf16.mxu0 %v1184
    %1280 = vmatpush1.bf16.msra.mxu0 %v1183
    %1281 = vmatprep.subr.bf16.mxu0 %v1186
    %1282 = vmatpush1.bf16.msra.mxu0 %v1185
    %1283 = vmatprep.subr.bf16.mxu0 %v1188
    %1284 = vmatpush1.bf16.msra.mxu0 %v1187
    %1285 = vmatprep.subr.bf16.mxu0 %v1190
    %1286 = vmatpush1.bf16.msra.mxu0 %v1189
    %1287 = vmatprep.subr.bf16.mxu0 %v1192
    %1288 = vmatpush1.bf16.msra.mxu0 %v1191
    %1289 = vmatprep.mubr.bf16.mxu0 %v955
    %1290 = vmatmul.mubr.bf16.gmra.mrb[0].mxu0 %v954
    %v1291 = vpop.f32.mrb[0].mxu0
    %v1292 = vadd.f32 %v1010, %v1291
    %v1293 = vpop.f32.mrb[0].mxu0
    %v1294 = vadd.f32 %v1014, %v1293
    %v1295 = vpop.f32.mrb[0].mxu0
    %v1296 = vadd.f32 %v1010, %v1295
    %v1297 = vpop.f32.mrb[0].mxu0
    %v1298 = vadd.f32 %v1014, %v1297
    %1299 = vdwg.mxu0
    %1300 = vmatprep.subr.bf16.mxu0 %v1194
    %1301 = vmatpush1.bf16.msra.mxu0 %v1193
    %1302 = vmatprep.subr.bf16.mxu0 %v1196
    %1303 = vmatpush1.bf16.msra.mxu0 %v1195
    %1304 = vmatprep.subr.bf16.mxu0 %v1198
    %1305 = vmatpush1.bf16.msra.mxu0 %v1197
    %1306 = vmatprep.subr.bf16.mxu0 %v1200
    %1307 = vmatpush1.bf16.msra.mxu0 %v1199
    %1308 = vmatprep.subr.bf16.mxu0 %v1202
    %1309 = vmatpush1.bf16.msra.mxu0 %v1201
    %1310 = vmatprep.subr.bf16.mxu0 %v1204
    %1311 = vmatpush1.bf16.msra.mxu0 %v1203
    %1312 = vmatprep.subr.bf16.mxu0 %v1206
    %1313 = vmatpush1.bf16.msra.mxu0 %v1205
    %1314 = vmatprep.subr.bf16.mxu0 %v1208
    %1315 = vmatpush1.bf16.msra.mxu0 %v1207
    %1316 = vmatprep.subr.bf16.mxu0 0
    %1317 = vmatpush1.bf16.msra.mxu0 0
    %1318 = vmatprep.subr.bf16.mxu0 0
    %1319 = vmatpush1.bf16.msra.mxu0 0
    %1320 = vmatprep.subr.bf16.mxu0 0
    %1321 = vmatpush1.bf16.msra.mxu0 0
    %1322 = vmatprep.subr.bf16.mxu0 0
    %1323 = vmatpush1.bf16.msra.mxu0 0
    %1324 = vmatprep.subr.bf16.mxu0 0
    %1325 = vmatpush1.bf16.msra.mxu0 0
    %1326 = vmatprep.subr.bf16.mxu0 0
    %1327 = vmatpush1.bf16.msra.mxu0 0
    %1328 = vmatprep.subr.bf16.mxu0 0
    %1329 = vmatpush1.bf16.msra.mxu0 0
    %1330 = vmatprep.subr.bf16.mxu0 0
    %1331 = vmatpush1.bf16.msra.mxu0 0
    %1332 = vmatprep.mubr.bf16.mxu0 0
    %1333 = vmatmul.mubr.bf16.gmra.mrb[0].mxu0 %v956
    %v1334 = vpop.f32.mrb[0].mxu0
    %v1335 = vadd.f32 %v1292, %v1334
    %v1336 = vpop.f32.mrb[0].mxu0
    %v1337 = vadd.f32 %v1294, %v1336
    %v1338 = vpop.f32.mrb[0].mxu0
    %v1339 = vadd.f32 %v1296, %v1338
    %v1340 = vpop.f32.mrb[0].mxu0
    %v1341 = vadd.f32 %v1298, %v1340
    %1342 = vdwg.mxu0
    %v1343 = vmax.f32 %v1335, 0.0
    %v1344 = vmax.f32 %v1337, 0.0
    %v1345 = vmax.f32 %v1339, 0.0
    %v1346 = vmax.f32 %v1341, 0.0
    %v1347 = vpack.c.bf16 %v1345, %v1343
    %v1348 = vpack.c.bf16 %v1346, %v1344
    %v1349 = vld [vmem:[#allocation13] sm:$0xf]
    %v1350 = vld [vmem:[#allocation13 + $0x4] sm:$0xf]
    %v1351 = vld [vmem:[#allocation13 + $0x8] sm:$0xf]
    %v1352 = vld [vmem:[#allocation13 + $0xc] sm:$0xf]
    %v1353 = vld [vmem:[#allocation13 + $0x10] sm:$0xf]
    %v1354 = vld [vmem:[#allocation13 + $0x14] sm:$0xf]
    %v1355 = vld [vmem:[#allocation13 + $0x18] sm:$0xf]
    %v1356 = vld [vmem:[#allocation13 + $0x1c] sm:$0xf]
    %v1357 = vld [vmem:[#allocation13 + $0x20] sm:$0xf]
    %v1358 = vld [vmem:[#allocation13 + $0x24] sm:$0xf]
    %v1359 = vld [vmem:[#allocation13 + $0x28] sm:$0xf]
    %v1360 = vld [vmem:[#allocation13 + $0x2c] sm:$0xf]
    %v1361 = vld [vmem:[#allocation13 + $0x30] sm:$0xf]
    %v1362 = vld [vmem:[#allocation13 + $0x34] sm:$0xf]
    %v1363 = vld [vmem:[#allocation13 + $0x38] sm:$0xf]
    %v1364 = vld [vmem:[#allocation13 + $0x3c] sm:$0xf]
    %v1365 = vld [vmem:[#allocation13 + $0x40] sm:$0xf]
    %v1366 = vld [vmem:[#allocation13 + $0x44] sm:$0xf]
    %v1367 = vld [vmem:[#allocation13 + $0x48] sm:$0xf]
    %v1368 = vld [vmem:[#allocation13 + $0x4c] sm:$0xf]
    %v1369 = vld [vmem:[#allocation13 + $0x50] sm:$0xf]
    %v1370 = vld [vmem:[#allocation13 + $0x54] sm:$0xf]
    %v1371 = vld [vmem:[#allocation13 + $0x58] sm:$0xf]
    %v1372 = vld [vmem:[#allocation13 + $0x5c] sm:$0xf]
    %v1373 = vld [vmem:[#allocation13 + $0x60] sm:$0xf]
    %v1374 = vld [vmem:[#allocation13 + $0x64] sm:$0xf]
    %v1375 = vld [vmem:[#allocation13 + $0x68] sm:$0xf]
    %v1376 = vld [vmem:[#allocation13 + $0x6c] sm:$0xf]
    %v1377 = vld [vmem:[#allocation13 + $0x70] sm:$0xf]
    %v1378 = vld [vmem:[#allocation13 + $0x74] sm:$0xf]
    %v1379 = vld [vmem:[#allocation13 + $0x78] sm:$0xf]
    %v1380 = vld [vmem:[#allocation13 + $0x7c] sm:$0xf]
    %v1381 = vld [vmem:[%s10 + $0x4] sm:$0x1]
    %v1383 = vlaneseq
    %v1384 = vshrl.u32 %v1383, 7
    %v1385 = vsub.s32 0, %v1384
    %v1386 = vrot.slane %v1381, %v1385
    %v1420 = vunpack.c.l.b16 %v1349
    %v1421 = vunpack.c.l.b16 %v1350
    %v1422 = vunpack.c.l.b16 %v1351
    %v1423 = vunpack.c.l.b16 %v1352
    %v1424 = vunpack.c.l.b16 %v1353
    %v1425 = vunpack.c.l.b16 %v1354
    %v1426 = vunpack.c.l.b16 %v1355
    %v1427 = vunpack.c.l.b16 %v1356
    %v1428 = vunpack.c.l.b16 %v1357
    %v1429 = vunpack.c.l.b16 %v1358
    %v1430 = vunpack.c.l.b16 %v1359
    %v1431 = vunpack.c.l.b16 %v1360
    %v1432 = vunpack.c.l.b16 %v1361
    %v1433 = vunpack.c.l.b16 %v1362
    %v1434 = vunpack.c.l.b16 %v1363
    %v1435 = vunpack.c.l.b16 %v1364
    %v1436 = vunpack.c.l.b16 %v1365
    %v1437 = vunpack.c.l.b16 %v1366
    %v1438 = vunpack.c.l.b16 %v1367
    %v1439 = vunpack.c.l.b16 %v1368
    %v1440 = vunpack.c.l.b16 %v1369
    %v1441 = vunpack.c.l.b16 %v1370
    %v1442 = vunpack.c.l.b16 %v1371
    %v1443 = vunpack.c.l.b16 %v1372
    %v1444 = vunpack.c.l.b16 %v1373
    %v1445 = vunpack.c.l.b16 %v1374
    %v1446 = vunpack.c.l.b16 %v1375
    %v1447 = vunpack.c.l.b16 %v1376
    %v1448 = vunpack.c.l.b16 %v1377
    %v1449 = vunpack.c.l.b16 %v1378
    %v1450 = vunpack.c.l.b16 %v1379
    %v1451 = vunpack.c.l.b16 %v1380
    %v1452 = vpack.c.b16 %v1421, %v1420
    %v1453 = vpack.c.b16 %v1423, %v1422
    %v1454 = vpack.c.b16 %v1425, %v1424
    %v1455 = vpack.c.b16 %v1427, %v1426
    %v1456 = vpack.c.b16 %v1429, %v1428
    %v1457 = vpack.c.b16 %v1431, %v1430
    %v1458 = vpack.c.b16 %v1433, %v1432
    %v1459 = vpack.c.b16 %v1435, %v1434
    %v1460 = vpack.c.b16 %v1437, %v1436
    %v1461 = vpack.c.b16 %v1439, %v1438
    %v1462 = vpack.c.b16 %v1441, %v1440
    %v1463 = vpack.c.b16 %v1443, %v1442
    %v1464 = vpack.c.b16 %v1445, %v1444
    %v1465 = vpack.c.b16 %v1447, %v1446
    %v1466 = vpack.c.b16 %v1449, %v1448
    %v1467 = vpack.c.b16 %v1451, %v1450
    %1484 = vmatprep.subr.bf16.mxu0 0
    %1485 = vmatpush1.bf16.msra.mxu0 %v1452
    %1486 = vmatprep.subr.bf16.mxu0 0
    %1487 = vmatpush1.bf16.msra.mxu0 %v1453
    %1488 = vmatprep.subr.bf16.mxu0 0
    %1489 = vmatpush1.bf16.msra.mxu0 %v1454
    %1490 = vmatprep.subr.bf16.mxu0 0
    %1491 = vmatpush1.bf16.msra.mxu0 %v1455
    %1492 = vmatprep.subr.bf16.mxu0 0
    %1493 = vmatpush1.bf16.msra.mxu0 %v1456
    %1494 = vmatprep.subr.bf16.mxu0 0
    %1495 = vmatpush1.bf16.msra.mxu0 %v1457
    %1496 = vmatprep.subr.bf16.mxu0 0
    %1497 = vmatpush1.bf16.msra.mxu0 %v1458
    %1498 = vmatprep.subr.bf16.mxu0 0
    %1499 = vmatpush1.bf16.msra.mxu0 %v1459
    %1500 = vmatprep.subr.bf16.mxu0 0
    %1501 = vmatpush1.bf16.msra.mxu0 %v1460
    %1502 = vmatprep.subr.bf16.mxu0 0
    %1503 = vmatpush1.bf16.msra.mxu0 %v1461
    %1504 = vmatprep.subr.bf16.mxu0 0
    %1505 = vmatpush1.bf16.msra.mxu0 %v1462
    %1506 = vmatprep.subr.bf16.mxu0 0
    %1507 = vmatpush1.bf16.msra.mxu0 %v1463
    %1508 = vmatprep.subr.bf16.mxu0 0
    %1509 = vmatpush1.bf16.msra.mxu0 %v1464
    %1510 = vmatprep.subr.bf16.mxu0 0
    %1511 = vmatpush1.bf16.msra.mxu0 %v1465
    %1512 = vmatprep.subr.bf16.mxu0 0
    %1513 = vmatpush1.bf16.msra.mxu0 %v1466
    %1514 = vmatprep.subr.bf16.mxu0 0
    %1515 = vmatpush1.bf16.msra.mxu0 %v1467
    %1516 = vmatprep.mubr.bf16.mxu0 %v1348
    %1517 = vmatmul.mubr.bf16.gmra.mrb[0].mxu0 %v1347
    %v1518 = vpop.f32.mrb[0].mxu0
    %v1519 = vadd.f32 %v1386, %v1518
    %v1520 = vpop.f32.mrb[0].mxu0
    %v1521 = vpop.f32.mrb[0].mxu0
    %v1522 = vadd.f32 %v1386, %v1521
    %v1523 = vpop.f32.mrb[0].mxu0
    %1524 = vdwg.mxu0
    %v1525 = vmax.f32 %v1519, 0.0
    %v1526 = vmax.f32 %v1522, 0.0
    %v1527 = vpack.c.bf16 %v1526, %v1525
    %v1528 = vld [vmem:[#allocation14] sm:$0xff]
    %v1529 = vld [vmem:[#allocation14 + $0x8] sm:$0xff]
    %v1530 = vld [vmem:[#allocation14 + $0x10] sm:$0xff]
    %v1531 = vld [vmem:[#allocation14 + $0x18] sm:$0xff]
    %v1532 = vld [vmem:[#allocation14 + $0x20] sm:$0xff]
    %v1533 = vld [vmem:[#allocation14 + $0x28] sm:$0xff]
    %v1534 = vld [vmem:[#allocation14 + $0x30] sm:$0xff]
    %v1535 = vld [vmem:[#allocation14 + $0x38] sm:$0xff]
    %v1536 = vld [vmem:[#allocation14 + $0x40] sm:$0xff]
    %v1537 = vld [vmem:[#allocation14 + $0x48] sm:$0xff]
    %v1538 = vld [vmem:[#allocation14 + $0x50] sm:$0xff]
    %v1539 = vld [vmem:[#allocation14 + $0x58] sm:$0xff]
    %v1540 = vld [vmem:[#allocation14 + $0x60] sm:$0xff]
    %v1541 = vld [vmem:[#allocation14 + $0x68] sm:$0xff]
    %v1542 = vld [vmem:[#allocation14 + $0x70] sm:$0xff]
    %v1543 = vld [vmem:[#allocation14 + $0x78] sm:$0xff]
    %v1544 = vld [vmem:[#allocation14 + $0x80] sm:$0xff]
    %v1545 = vld [vmem:[#allocation14 + $0x88] sm:$0xff]
    %v1546 = vld [vmem:[#allocation14 + $0x90] sm:$0xff]
    %v1547 = vld [vmem:[#allocation14 + $0x98] sm:$0xff]
    %v1548 = vld [vmem:[#allocation14 + $0xa0] sm:$0xff]
    %v1549 = vld [vmem:[#allocation14 + $0xa8] sm:$0xff]
    %v1550 = vld [vmem:[#allocation14 + $0xb0] sm:$0xff]
    %v1551 = vld [vmem:[#allocation14 + $0xb8] sm:$0xff]
    %v1552 = vld [vmem:[#allocation14 + $0xc0] sm:$0xff]
    %v1553 = vld [vmem:[#allocation14 + $0xc8] sm:$0xff]
    %v1554 = vld [vmem:[#allocation14 + $0xd0] sm:$0xff]
    %v1555 = vld [vmem:[#allocation14 + $0xd8] sm:$0xff]
    %v1556 = vld [vmem:[#allocation14 + $0xe0] sm:$0xff]
    %v1557 = vld [vmem:[#allocation14 + $0xe8] sm:$0xff]
    %v1558 = vld [vmem:[#allocation14 + $0xf0] sm:$0xff]
    %v1559 = vld [vmem:[#allocation14 + $0xf8] sm:$0xff]
    %v1560 = vld [vmem:[%s10 + $0x5] sm:$0xf]
    %v1562 = vlaneseq
    %v1563 = vshrl.u32 %v1562, 7
    %v1564 = vsub.s32 0, %v1563
    %v1565 = vrot.slane %v1560, %v1564
    %v1566 = vlaneseq
    %v1567 = vshrl.u32 %v1566, 7
    %v1568 = vsub.s32 1, %v1567
    %v1569 = vrot.slane %v1560, %v1568
    %v1570 = vlaneseq
    %v1571 = vshrl.u32 %v1570, 7
    %v1572 = vsub.s32 2, %v1571
    %v1573 = vrot.slane %v1560, %v1572
    %v1574 = vlaneseq
    %v1575 = vshrl.u32 %v1574, 7
    %v1576 = vsub.s32 3, %v1575
    %v1577 = vrot.slane %v1560, %v1576
    %v1614 = vunpack.c.l.b16 %v1528
    %v1615 = vunpack.c.h.b16 %v1528
    %v1616 = vunpack.c.l.b16 %v1529
    %v1617 = vunpack.c.h.b16 %v1529
    %v1618 = vunpack.c.l.b16 %v1530
    %v1619 = vunpack.c.h.b16 %v1530
    %v1620 = vunpack.c.l.b16 %v1531
    %v1621 = vunpack.c.h.b16 %v1531
    %v1622 = vunpack.c.l.b16 %v1532
    %v1623 = vunpack.c.h.b16 %v1532
    %v1624 = vunpack.c.l.b16 %v1533
    %v1625 = vunpack.c.h.b16 %v1533
    %v1626 = vunpack.c.l.b16 %v1534
    %v1627 = vunpack.c.h.b16 %v1534
    %v1628 = vunpack.c.l.b16 %v1535
    %v1629 = vunpack.c.h.b16 %v1535
    %v1630 = vunpack.c.l.b16 %v1536
    %v1631 = vunpack.c.h.b16 %v1536
    %v1632 = vunpack.c.l.b16 %v1537
    %v1633 = vunpack.c.h.b16 %v1537
    %v1634 = vunpack.c.l.b16 %v1538
    %v1635 = vunpack.c.h.b16 %v1538
    %v1636 = vunpack.c.l.b16 %v1539
    %v1637 = vunpack.c.h.b16 %v1539
    %v1638 = vunpack.c.l.b16 %v1540
    %v1639 = vunpack.c.h.b16 %v1540
    %v1640 = vunpack.c.l.b16 %v1541
    %v1641 = vunpack.c.h.b16 %v1541
    %v1642 = vunpack.c.l.b16 %v1542
    %v1643 = vunpack.c.h.b16 %v1542
    %v1644 = vunpack.c.l.b16 %v1543
    %v1645 = vunpack.c.h.b16 %v1543
    %v1646 = vunpack.c.l.b16 %v1544
    %v1647 = vunpack.c.h.b16 %v1544
    %v1648 = vunpack.c.l.b16 %v1545
    %v1649 = vunpack.c.h.b16 %v1545
    %v1650 = vunpack.c.l.b16 %v1546
    %v1651 = vunpack.c.h.b16 %v1546
    %v1652 = vunpack.c.l.b16 %v1547
    %v1653 = vunpack.c.h.b16 %v1547
    %v1654 = vunpack.c.l.b16 %v1548
    %v1655 = vunpack.c.h.b16 %v1548
    %v1656 = vunpack.c.l.b16 %v1549
    %v1657 = vunpack.c.h.b16 %v1549
    %v1658 = vunpack.c.l.b16 %v1550
    %v1659 = vunpack.c.h.b16 %v1550
    %v1660 = vunpack.c.l.b16 %v1551
    %v1661 = vunpack.c.h.b16 %v1551
    %v1662 = vunpack.c.l.b16 %v1552
    %v1663 = vunpack.c.h.b16 %v1552
    %v1664 = vunpack.c.l.b16 %v1553
    %v1665 = vunpack.c.h.b16 %v1553
    %v1666 = vunpack.c.l.b16 %v1554
    %v1667 = vunpack.c.h.b16 %v1554
    %v1668 = vunpack.c.l.b16 %v1555
    %v1669 = vunpack.c.h.b16 %v1555
    %v1670 = vunpack.c.l.b16 %v1556
    %v1671 = vunpack.c.h.b16 %v1556
    %v1672 = vunpack.c.l.b16 %v1557
    %v1673 = vunpack.c.h.b16 %v1557
    %v1674 = vunpack.c.l.b16 %v1558
    %v1675 = vunpack.c.h.b16 %v1558
    %v1676 = vunpack.c.l.b16 %v1559
    %v1677 = vunpack.c.h.b16 %v1559
    %v1678 = vpack.c.b16 %v1618, %v1614
    %v1679 = vpack.c.b16 %v1619, %v1615
    %v1680 = vpack.c.b16 %v1620, %v1616
    %v1681 = vpack.c.b16 %v1621, %v1617
    %v1682 = vpack.c.b16 %v1626, %v1622
    %v1683 = vpack.c.b16 %v1627, %v1623
    %v1684 = vpack.c.b16 %v1628, %v1624
    %v1685 = vpack.c.b16 %v1629, %v1625
    %v1686 = vpack.c.b16 %v1634, %v1630
    %v1687 = vpack.c.b16 %v1635, %v1631
    %v1688 = vpack.c.b16 %v1636, %v1632
    %v1689 = vpack.c.b16 %v1637, %v1633
    %v1690 = vpack.c.b16 %v1642, %v1638
    %v1691 = vpack.c.b16 %v1643, %v1639
    %v1692 = vpack.c.b16 %v1644, %v1640
    %v1693 = vpack.c.b16 %v1645, %v1641
    %v1694 = vpack.c.b16 %v1650, %v1646
    %v1695 = vpack.c.b16 %v1651, %v1647
    %v1696 = vpack.c.b16 %v1652, %v1648
    %v1697 = vpack.c.b16 %v1653, %v1649
    %v1698 = vpack.c.b16 %v1658, %v1654
    %v1699 = vpack.c.b16 %v1659, %v1655
    %v1700 = vpack.c.b16 %v1660, %v1656
    %v1701 = vpack.c.b16 %v1661, %v1657
    %v1702 = vpack.c.b16 %v1666, %v1662
    %v1703 = vpack.c.b16 %v1667, %v1663
    %v1704 = vpack.c.b16 %v1668, %v1664
    %v1705 = vpack.c.b16 %v1669, %v1665
    %v1706 = vpack.c.b16 %v1674, %v1670
    %v1707 = vpack.c.b16 %v1675, %v1671
    %v1708 = vpack.c.b16 %v1676, %v1672
    %v1709 = vpack.c.b16 %v1677, %v1673
    %1742 = vmatprep.subr.bf16.mxu0 %v1679
    %1743 = vmatpush1.bf16.msra.mxu0 %v1678
    %1744 = vmatprep.subr.bf16.mxu0 %v1683
    %1745 = vmatpush1.bf16.msra.mxu0 %v1682
    %1746 = vmatprep.subr.bf16.mxu0 %v1687
    %1747 = vmatpush1.bf16.msra.mxu0 %v1686
    %1748 = vmatprep.subr.bf16.mxu0 %v1691
    %1749 = vmatpush1.bf16.msra.mxu0 %v1690
    %1750 = vmatprep.subr.bf16.mxu0 %v1695
    %1751 = vmatpush1.bf16.msra.mxu0 %v1694
    %1752 = vmatprep.subr.bf16.mxu0 %v1699
    %1753 = vmatpush1.bf16.msra.mxu0 %v1698
    %1754 = vmatprep.subr.bf16.mxu0 %v1703
    %1755 = vmatpush1.bf16.msra.mxu0 %v1702
    %1756 = vmatprep.subr.bf16.mxu0 %v1707
    %1757 = vmatpush1.bf16.msra.mxu0 %v1706
    %1758 = vmatprep.subr.bf16.mxu0 0
    %1759 = vmatpush1.bf16.msra.mxu0 0
    %1760 = vmatprep.subr.bf16.mxu0 0
    %1761 = vmatpush1.bf16.msra.mxu0 0
    %1762 = vmatprep.subr.bf16.mxu0 0
    %1763 = vmatpush1.bf16.msra.mxu0 0
    %1764 = vmatprep.subr.bf16.mxu0 0
    %1765 = vmatpush1.bf16.msra.mxu0 0
    %1766 = vmatprep.subr.bf16.mxu0 0
    %1767 = vmatpush1.bf16.msra.mxu0 0
    %1768 = vmatprep.subr.bf16.mxu0 0
    %1769 = vmatpush1.bf16.msra.mxu0 0
    %1770 = vmatprep.subr.bf16.mxu0 0
    %1771 = vmatpush1.bf16.msra.mxu0 0
    %1772 = vmatprep.subr.bf16.mxu0 0
    %1773 = vmatpush1.bf16.msra.mxu0 0
    %1774 = vmatprep.mubr.bf16.mxu0 0
    %1775 = vmatmul.mubr.bf16.gmra.mrb[0].mxu0 %v1527
    %v1776 = vpop.f32.mrb[0].mxu0
    %v1777 = vadd.f32 %v1565, %v1776
    %v1778 = vpop.f32.mrb[0].mxu0
    %v1779 = vadd.f32 %v1569, %v1778
    %v1780 = vpop.f32.mrb[0].mxu0
    %v1781 = vadd.f32 %v1565, %v1780
    %v1782 = vpop.f32.mrb[0].mxu0
    %v1783 = vadd.f32 %v1569, %v1782
    %1784 = vdwg.mxu0
    %1785 = vmatprep.subr.bf16.mxu0 %v1681
    %1786 = vmatpush1.bf16.msra.mxu0 %v1680
    %1787 = vmatprep.subr.bf16.mxu0 %v1685
    %1788 = vmatpush1.bf16.msra.mxu0 %v1684
    %1789 = vmatprep.subr.bf16.mxu0 %v1689
    %1790 = vmatpush1.bf16.msra.mxu0 %v1688
    %1791 = vmatprep.subr.bf16.mxu0 %v1693
    %1792 = vmatpush1.bf16.msra.mxu0 %v1692
    %1793 = vmatprep.subr.bf16.mxu0 %v1697
    %1794 = vmatpush1.bf16.msra.mxu0 %v1696
    %1795 = vmatprep.subr.bf16.mxu0 %v1701
    %1796 = vmatpush1.bf16.msra.mxu0 %v1700
    %1797 = vmatprep.subr.bf16.mxu0 %v1705
    %1798 = vmatpush1.bf16.msra.mxu0 %v1704
    %1799 = vmatprep.subr.bf16.mxu0 %v1709
    %1800 = vmatpush1.bf16.msra.mxu0 %v1708
    %1801 = vmatprep.subr.bf16.mxu0 0
    %1802 = vmatpush1.bf16.msra.mxu0 0
    %1803 = vmatprep.subr.bf16.mxu0 0
    %1804 = vmatpush1.bf16.msra.mxu0 0
    %1805 = vmatprep.subr.bf16.mxu0 0
    %1806 = vmatpush1.bf16.msra.mxu0 0
    %1807 = vmatprep.subr.bf16.mxu0 0
    %1808 = vmatpush1.bf16.msra.mxu0 0
    %1809 = vmatprep.subr.bf16.mxu0 0
    %1810 = vmatpush1.bf16.msra.mxu0 0
    %1811 = vmatprep.subr.bf16.mxu0 0
    %1812 = vmatpush1.bf16.msra.mxu0 0
    %1813 = vmatprep.subr.bf16.mxu0 0
    %1814 = vmatpush1.bf16.msra.mxu0 0
    %1815 = vmatprep.subr.bf16.mxu0 0
    %1816 = vmatpush1.bf16.msra.mxu0 0
    %1817 = vmatprep.mubr.bf16.mxu0 0
    %1818 = vmatmul.mubr.bf16.gmra.mrb[0].mxu0 %v1527
    %v1819 = vpop.f32.mrb[0].mxu0
    %v1820 = vadd.f32 %v1573, %v1819
    %v1821 = vpop.f32.mrb[0].mxu0
    %v1822 = vadd.f32 %v1577, %v1821
    %v1823 = vpop.f32.mrb[0].mxu0
    %v1824 = vadd.f32 %v1573, %v1823
    %v1825 = vpop.f32.mrb[0].mxu0
    %v1826 = vadd.f32 %v1577, %v1825
    %1827 = vdwg.mxu0
    %v1828 = vmax.f32 %v1777, 0.0
    %v1829 = vmax.f32 %v1779, 0.0
    %v1830 = vmax.f32 %v1820, 0.0
    %v1831 = vmax.f32 %v1822, 0.0
    %v1832 = vmax.f32 %v1781, 0.0
    %v1833 = vmax.f32 %v1783, 0.0
    %v1834 = vmax.f32 %v1824, 0.0
    %v1835 = vmax.f32 %v1826, 0.0
    %v1836 = vpack.c.bf16 %v1832, %v1828
    %v1837 = vpack.c.bf16 %v1833, %v1829
    %v1838 = vpack.c.bf16 %v1834, %v1830
    %v1839 = vpack.c.bf16 %v1835, %v1831
    %v1840 = vld [vmem:[#allocation16] sm:$0xf]
    %v1841 = vld [vmem:[#allocation16 + $0x4] sm:$0xf]
    %v1842 = vld [vmem:[#allocation16 + $0x8] sm:$0xf]
    %v1843 = vld [vmem:[#allocation16 + $0xc] sm:$0xf]
    %v1844 = vld [vmem:[#allocation16 + $0x10] sm:$0xf]
    %v1845 = vld [vmem:[#allocation16 + $0x14] sm:$0xf]
    %v1846 = vld [vmem:[#allocation16 + $0x18] sm:$0xf]
    %v1847 = vld [vmem:[#allocation16 + $0x1c] sm:$0xf]
    %v1848 = vld [vmem:[#allocation16 + $0x20] sm:$0xf]
    %v1849 = vld [vmem:[#allocation16 + $0x24] sm:$0xf]
    %v1850 = vld [vmem:[#allocation16 + $0x28] sm:$0xf]
    %v1851 = vld [vmem:[#allocation16 + $0x2c] sm:$0xf]
    %v1852 = vld [vmem:[#allocation16 + $0x30] sm:$0xf]
    %v1853 = vld [vmem:[#allocation16 + $0x34] sm:$0xf]
    %v1854 = vld [vmem:[#allocation16 + $0x38] sm:$0xf]
    %v1855 = vld [vmem:[#allocation16 + $0x3c] sm:$0xf]
    %v1856 = vld [vmem:[#allocation16 + $0x40] sm:$0xf]
    %v1857 = vld [vmem:[#allocation16 + $0x44] sm:$0xf]
    %v1858 = vld [vmem:[#allocation16 + $0x48] sm:$0xf]
    %v1859 = vld [vmem:[#allocation16 + $0x4c] sm:$0xf]
    %v1860 = vld [vmem:[#allocation16 + $0x50] sm:$0xf]
    %v1861 = vld [vmem:[#allocation16 + $0x54] sm:$0xf]
    %v1862 = vld [vmem:[#allocation16 + $0x58] sm:$0xf]
    %v1863 = vld [vmem:[#allocation16 + $0x5c] sm:$0xf]
    %v1864 = vld [vmem:[#allocation16 + $0x60] sm:$0xf]
    %v1865 = vld [vmem:[#allocation16 + $0x64] sm:$0xf]
    %v1866 = vld [vmem:[#allocation16 + $0x68] sm:$0xf]
    %v1867 = vld [vmem:[#allocation16 + $0x6c] sm:$0xf]
    %v1868 = vld [vmem:[#allocation16 + $0x70] sm:$0xf]
    %v1869 = vld [vmem:[#allocation16 + $0x74] sm:$0xf]
    %v1870 = vld [vmem:[#allocation16 + $0x78] sm:$0xf]
    %v1871 = vld [vmem:[#allocation16 + $0x7c] sm:$0xf]
    %v1872 = vld [vmem:[#allocation16 + $0x80] sm:$0xf]
    %v1873 = vld [vmem:[#allocation16 + $0x84] sm:$0xf]
    %v1874 = vld [vmem:[#allocation16 + $0x88] sm:$0xf]
    %v1875 = vld [vmem:[#allocation16 + $0x8c] sm:$0xf]
    %v1876 = vld [vmem:[#allocation16 + $0x90] sm:$0xf]
    %v1877 = vld [vmem:[#allocation16 + $0x94] sm:$0xf]
    %v1878 = vld [vmem:[#allocation16 + $0x98] sm:$0xf]
    %v1879 = vld [vmem:[#allocation16 + $0x9c] sm:$0xf]
    %v1880 = vld [vmem:[#allocation16 + $0xa0] sm:$0xf]
    %v1881 = vld [vmem:[#allocation16 + $0xa4] sm:$0xf]
    %v1882 = vld [vmem:[#allocation16 + $0xa8] sm:$0xf]
    %v1883 = vld [vmem:[#allocation16 + $0xac] sm:$0xf]
    %v1884 = vld [vmem:[#allocation16 + $0xb0] sm:$0xf]
    %v1885 = vld [vmem:[#allocation16 + $0xb4] sm:$0xf]
    %v1886 = vld [vmem:[#allocation16 + $0xb8] sm:$0xf]
    %v1887 = vld [vmem:[#allocation16 + $0xbc] sm:$0xf]
    %v1888 = vld [vmem:[#allocation16 + $0xc0] sm:$0xf]
    %v1889 = vld [vmem:[#allocation16 + $0xc4] sm:$0xf]
    %v1890 = vld [vmem:[#allocation16 + $0xc8] sm:$0xf]
    %v1891 = vld [vmem:[#allocation16 + $0xcc] sm:$0xf]
    %v1892 = vld [vmem:[#allocation16 + $0xd0] sm:$0xf]
    %v1893 = vld [vmem:[#allocation16 + $0xd4] sm:$0xf]
    %v1894 = vld [vmem:[#allocation16 + $0xd8] sm:$0xf]
    %v1895 = vld [vmem:[#allocation16 + $0xdc] sm:$0xf]
    %v1896 = vld [vmem:[#allocation16 + $0xe0] sm:$0xf]
    %v1897 = vld [vmem:[#allocation16 + $0xe4] sm:$0xf]
    %v1898 = vld [vmem:[#allocation16 + $0xe8] sm:$0xf]
    %v1899 = vld [vmem:[#allocation16 + $0xec] sm:$0xf]
    %v1900 = vld [vmem:[#allocation16 + $0xf0] sm:$0xf]
    %v1901 = vld [vmem:[#allocation16 + $0xf4] sm:$0xf]
    %v1902 = vld [vmem:[#allocation16 + $0xf8] sm:$0xf]
    %v1903 = vld [vmem:[#allocation16 + $0xfc] sm:$0xf]
    %v1904 = vld [vmem:[%s10 + $0x9] sm:$0x1]
    %v1906 = vlaneseq
    %v1907 = vshrl.u32 %v1906, 7
    %v1908 = vsub.s32 0, %v1907
    %v1909 = vrot.slane %v1904, %v1908
    %v1975 = vunpack.c.l.b16 %v1840
    %v1976 = vunpack.c.l.b16 %v1841
    %v1977 = vunpack.c.l.b16 %v1842
    %v1978 = vunpack.c.l.b16 %v1843
    %v1979 = vunpack.c.l.b16 %v1844
    %v1980 = vunpack.c.l.b16 %v1845
    %v1981 = vunpack.c.l.b16 %v1846
    %v1982 = vunpack.c.l.b16 %v1847
    %v1983 = vunpack.c.l.b16 %v1848
    %v1984 = vunpack.c.l.b16 %v1849
    %v1985 = vunpack.c.l.b16 %v1850
    %v1986 = vunpack.c.l.b16 %v1851
    %v1987 = vunpack.c.l.b16 %v1852
    %v1988 = vunpack.c.l.b16 %v1853
    %v1989 = vunpack.c.l.b16 %v1854
    %v1990 = vunpack.c.l.b16 %v1855
    %v1991 = vunpack.c.l.b16 %v1856
    %v1992 = vunpack.c.l.b16 %v1857
    %v1993 = vunpack.c.l.b16 %v1858
    %v1994 = vunpack.c.l.b16 %v1859
    %v1995 = vunpack.c.l.b16 %v1860
    %v1996 = vunpack.c.l.b16 %v1861
    %v1997 = vunpack.c.l.b16 %v1862
    %v1998 = vunpack.c.l.b16 %v1863
    %v1999 = vunpack.c.l.b16 %v1864
    %v2000 = vunpack.c.l.b16 %v1865
    %v2001 = vunpack.c.l.b16 %v1866
    %v2002 = vunpack.c.l.b16 %v1867
    %v2003 = vunpack.c.l.b16 %v1868
    %v2004 = vunpack.c.l.b16 %v1869
    %v2005 = vunpack.c.l.b16 %v1870
    %v2006 = vunpack.c.l.b16 %v1871
    %v2007 = vunpack.c.l.b16 %v1872
    %v2008 = vunpack.c.l.b16 %v1873
    %v2009 = vunpack.c.l.b16 %v1874
    %v2010 = vunpack.c.l.b16 %v1875
    %v2011 = vunpack.c.l.b16 %v1876
    %v2012 = vunpack.c.l.b16 %v1877
    %v2013 = vunpack.c.l.b16 %v1878
    %v2014 = vunpack.c.l.b16 %v1879
    %v2015 = vunpack.c.l.b16 %v1880
    %v2016 = vunpack.c.l.b16 %v1881
    %v2017 = vunpack.c.l.b16 %v1882
    %v2018 = vunpack.c.l.b16 %v1883
    %v2019 = vunpack.c.l.b16 %v1884
    %v2020 = vunpack.c.l.b16 %v1885
    %v2021 = vunpack.c.l.b16 %v1886
    %v2022 = vunpack.c.l.b16 %v1887
    %v2023 = vunpack.c.l.b16 %v1888
    %v2024 = vunpack.c.l.b16 %v1889
    %v2025 = vunpack.c.l.b16 %v1890
    %v2026 = vunpack.c.l.b16 %v1891
    %v2027 = vunpack.c.l.b16 %v1892
    %v2028 = vunpack.c.l.b16 %v1893
    %v2029 = vunpack.c.l.b16 %v1894
    %v2030 = vunpack.c.l.b16 %v1895
    %v2031 = vunpack.c.l.b16 %v1896
    %v2032 = vunpack.c.l.b16 %v1897
    %v2033 = vunpack.c.l.b16 %v1898
    %v2034 = vunpack.c.l.b16 %v1899
    %v2035 = vunpack.c.l.b16 %v1900
    %v2036 = vunpack.c.l.b16 %v1901
    %v2037 = vunpack.c.l.b16 %v1902
    %v2038 = vunpack.c.l.b16 %v1903
    %v2039 = vpack.c.b16 %v1976, %v1975
    %v2040 = vpack.c.b16 %v1978, %v1977
    %v2041 = vpack.c.b16 %v1980, %v1979
    %v2042 = vpack.c.b16 %v1982, %v1981
    %v2043 = vpack.c.b16 %v1984, %v1983
    %v2044 = vpack.c.b16 %v1986, %v1985
    %v2045 = vpack.c.b16 %v1988, %v1987
    %v2046 = vpack.c.b16 %v1990, %v1989
    %v2047 = vpack.c.b16 %v1992, %v1991
    %v2048 = vpack.c.b16 %v1994, %v1993
    %v2049 = vpack.c.b16 %v1996, %v1995
    %v2050 = vpack.c.b16 %v1998, %v1997
    %v2051 = vpack.c.b16 %v2000, %v1999
    %v2052 = vpack.c.b16 %v2002, %v2001
    %v2053 = vpack.c.b16 %v2004, %v2003
    %v2054 = vpack.c.b16 %v2006, %v2005
    %v2055 = vpack.c.b16 %v2008, %v2007
    %v2056 = vpack.c.b16 %v2010, %v2009
    %v2057 = vpack.c.b16 %v2012, %v2011
    %v2058 = vpack.c.b16 %v2014, %v2013
    %v2059 = vpack.c.b16 %v2016, %v2015
    %v2060 = vpack.c.b16 %v2018, %v2017
    %v2061 = vpack.c.b16 %v2020, %v2019
    %v2062 = vpack.c.b16 %v2022, %v2021
    %v2063 = vpack.c.b16 %v2024, %v2023
    %v2064 = vpack.c.b16 %v2026, %v2025
    %v2065 = vpack.c.b16 %v2028, %v2027
    %v2066 = vpack.c.b16 %v2030, %v2029
    %v2067 = vpack.c.b16 %v2032, %v2031
    %v2068 = vpack.c.b16 %v2034, %v2033
    %v2069 = vpack.c.b16 %v2036, %v2035
    %v2070 = vpack.c.b16 %v2038, %v2037
    %2103 = vmatprep.subr.bf16.mxu0 0
    %2104 = vmatpush1.bf16.msra.mxu0 %v2039
    %2105 = vmatprep.subr.bf16.mxu0 0
    %2106 = vmatpush1.bf16.msra.mxu0 %v2040
    %2107 = vmatprep.subr.bf16.mxu0 0
    %2108 = vmatpush1.bf16.msra.mxu0 %v2041
    %2109 = vmatprep.subr.bf16.mxu0 0
    %2110 = vmatpush1.bf16.msra.mxu0 %v2042
    %2111 = vmatprep.subr.bf16.mxu0 0
    %2112 = vmatpush1.bf16.msra.mxu0 %v2043
    %2113 = vmatprep.subr.bf16.mxu0 0
    %2114 = vmatpush1.bf16.msra.mxu0 %v2044
    %2115 = vmatprep.subr.bf16.mxu0 0
    %2116 = vmatpush1.bf16.msra.mxu0 %v2045
    %2117 = vmatprep.subr.bf16.mxu0 0
    %2118 = vmatpush1.bf16.msra.mxu0 %v2046
    %2119 = vmatprep.subr.bf16.mxu0 0
    %2120 = vmatpush1.bf16.msra.mxu0 %v2047
    %2121 = vmatprep.subr.bf16.mxu0 0
    %2122 = vmatpush1.bf16.msra.mxu0 %v2048
    %2123 = vmatprep.subr.bf16.mxu0 0
    %2124 = vmatpush1.bf16.msra.mxu0 %v2049
    %2125 = vmatprep.subr.bf16.mxu0 0
    %2126 = vmatpush1.bf16.msra.mxu0 %v2050
    %2127 = vmatprep.subr.bf16.mxu0 0
    %2128 = vmatpush1.bf16.msra.mxu0 %v2051
    %2129 = vmatprep.subr.bf16.mxu0 0
    %2130 = vmatpush1.bf16.msra.mxu0 %v2052
    %2131 = vmatprep.subr.bf16.mxu0 0
    %2132 = vmatpush1.bf16.msra.mxu0 %v2053
    %2133 = vmatprep.subr.bf16.mxu0 0
    %2134 = vmatpush1.bf16.msra.mxu0 %v2054
    %2135 = vmatprep.mubr.bf16.mxu0 %v1837
    %2136 = vmatmul.mubr.bf16.gmra.mrb[0].mxu0 %v1836
    %v2137 = vpop.f32.mrb[0].mxu0
    %v2138 = vadd.f32 %v1909, %v2137
    %v2139 = vpop.f32.mrb[0].mxu0
    %v2140 = vpop.f32.mrb[0].mxu0
    %v2141 = vadd.f32 %v1909, %v2140
    %v2142 = vpop.f32.mrb[0].mxu0
    %2143 = vdwg.mxu0
    %2144 = vmatprep.subr.bf16.mxu0 0
    %2145 = vmatpush1.bf16.msra.mxu0 %v2055
    %2146 = vmatprep.subr.bf16.mxu0 0
    %2147 = vmatpush1.bf16.msra.mxu0 %v2056
    %2148 = vmatprep.subr.bf16.mxu0 0
    %2149 = vmatpush1.bf16.msra.mxu0 %v2057
    %2150 = vmatprep.subr.bf16.mxu0 0
    %2151 = vmatpush1.bf16.msra.mxu0 %v2058
    %2152 = vmatprep.subr.bf16.mxu0 0
    %2153 = vmatpush1.bf16.msra.mxu0 %v2059
    %2154 = vmatprep.subr.bf16.mxu0 0
    %2155 = vmatpush1.bf16.msra.mxu0 %v2060
    %2156 = vmatprep.subr.bf16.mxu0 0
    %2157 = vmatpush1.bf16.msra.mxu0 %v2061
    %2158 = vmatprep.subr.bf16.mxu0 0
    %2159 = vmatpush1.bf16.msra.mxu0 %v2062
    %2160 = vmatprep.subr.bf16.mxu0 0
    %2161 = vmatpush1.bf16.msra.mxu0 %v2063
    %2162 = vmatprep.subr.bf16.mxu0 0
    %2163 = vmatpush1.bf16.msra.mxu0 %v2064
    %2164 = vmatprep.subr.bf16.mxu0 0
    %2165 = vmatpush1.bf16.msra.mxu0 %v2065
    %2166 = vmatprep.subr.bf16.mxu0 0
    %2167 = vmatpush1.bf16.msra.mxu0 %v2066
    %2168 = vmatprep.subr.bf16.mxu0 0
    %2169 = vmatpush1.bf16.msra.mxu0 %v2067
    %2170 = vmatprep.subr.bf16.mxu0 0
    %2171 = vmatpush1.bf16.msra.mxu0 %v2068
    %2172 = vmatprep.subr.bf16.mxu0 0
    %2173 = vmatpush1.bf16.msra.mxu0 %v2069
    %2174 = vmatprep.subr.bf16.mxu0 0
    %2175 = vmatpush1.bf16.msra.mxu0 %v2070
    %2176 = vmatprep.mubr.bf16.mxu0 %v1839
    %2177 = vmatmul.mubr.bf16.gmra.mrb[0].mxu0 %v1838
    %v2178 = vpop.f32.mrb[0].mxu0
    %v2179 = vadd.f32 %v2138, %v2178
    %v2180 = vpop.f32.mrb[0].mxu0
    %v2181 = vpop.f32.mrb[0].mxu0
    %v2182 = vadd.f32 %v2141, %v2181
    %v2183 = vpop.f32.mrb[0].mxu0
    %2184 = vdwg.mxu0
    %v2185 = vmax.f32 %v2179, 0.0
    %v2186 = vmax.f32 %v2182, 0.0
    %v2187 = vpack.c.bf16 %v2186, %v2185
    %v2188 = vld [vmem:[#allocation17] sm:$0xf]
    %v2189 = vld [vmem:[#allocation17 + $0x4] sm:$0xf]
    %v2190 = vld [vmem:[#allocation17 + $0x8] sm:$0xf]
    %v2191 = vld [vmem:[#allocation17 + $0xc] sm:$0xf]
    %v2192 = vld [vmem:[#allocation17 + $0x10] sm:$0xf]
    %v2193 = vld [vmem:[#allocation17 + $0x14] sm:$0xf]
    %v2194 = vld [vmem:[#allocation17 + $0x18] sm:$0xf]
    %v2195 = vld [vmem:[#allocation17 + $0x1c] sm:$0xf]
    %v2196 = vld [vmem:[#allocation17 + $0x20] sm:$0xf]
    %v2197 = vld [vmem:[#allocation17 + $0x24] sm:$0xf]
    %v2198 = vld [vmem:[#allocation17 + $0x28] sm:$0xf]
    %v2199 = vld [vmem:[#allocation17 + $0x2c] sm:$0xf]
    %v2200 = vld [vmem:[#allocation17 + $0x30] sm:$0xf]
    %v2201 = vld [vmem:[#allocation17 + $0x34] sm:$0xf]
    %v2202 = vld [vmem:[#allocation17 + $0x38] sm:$0xf]
    %v2203 = vld [vmem:[#allocation17 + $0x3c] sm:$0xf]
    %v2204 = vld [vmem:[%s10 + $0xa] sm:$0x1]
    %v2206 = vlaneseq
    %v2207 = vshrl.u32 %v2206, 7
    %v2208 = vsub.s32 0, %v2207
    %v2209 = vrot.slane %v2204, %v2208
    %v2227 = vunpack.c.l.b16 %v2188
    %v2228 = vunpack.c.l.b16 %v2189
    %v2229 = vunpack.c.l.b16 %v2190
    %v2230 = vunpack.c.l.b16 %v2191
    %v2231 = vunpack.c.l.b16 %v2192
    %v2232 = vunpack.c.l.b16 %v2193
    %v2233 = vunpack.c.l.b16 %v2194
    %v2234 = vunpack.c.l.b16 %v2195
    %v2235 = vunpack.c.l.b16 %v2196
    %v2236 = vunpack.c.l.b16 %v2197
    %v2237 = vunpack.c.l.b16 %v2198
    %v2238 = vunpack.c.l.b16 %v2199
    %v2239 = vunpack.c.l.b16 %v2200
    %v2240 = vunpack.c.l.b16 %v2201
    %v2241 = vunpack.c.l.b16 %v2202
    %v2242 = vunpack.c.l.b16 %v2203
    %v2243 = vpack.c.b16 %v2228, %v2227
    %v2244 = vpack.c.b16 %v2230, %v2229
    %v2245 = vpack.c.b16 %v2232, %v2231
    %v2246 = vpack.c.b16 %v2234, %v2233
    %v2247 = vpack.c.b16 %v2236, %v2235
    %v2248 = vpack.c.b16 %v2238, %v2237
    %v2249 = vpack.c.b16 %v2240, %v2239
    %v2250 = vpack.c.b16 %v2242, %v2241
    %2259 = vmatprep.subr.bf16.mxu0 0
    %2260 = vmatpush1.bf16.msra.mxu0 %v2243
    %2261 = vmatprep.subr.bf16.mxu0 0
    %2262 = vmatpush1.bf16.msra.mxu0 %v2244
    %2263 = vmatprep.subr.bf16.mxu0 0
    %2264 = vmatpush1.bf16.msra.mxu0 %v2245
    %2265 = vmatprep.subr.bf16.mxu0 0
    %2266 = vmatpush1.bf16.msra.mxu0 %v2246
    %2267 = vmatprep.subr.bf16.mxu0 0
    %2268 = vmatpush1.bf16.msra.mxu0 %v2247
    %2269 = vmatprep.subr.bf16.mxu0 0
    %2270 = vmatpush1.bf16.msra.mxu0 %v2248
    %2271 = vmatprep.subr.bf16.mxu0 0
    %2272 = vmatpush1.bf16.msra.mxu0 %v2249
    %2273 = vmatprep.subr.bf16.mxu0 0
    %2274 = vmatpush1.bf16.msra.mxu0 %v2250
    %2275 = vmatprep.subr.bf16.mxu0 0
    %2276 = vmatpush1.bf16.msra.mxu0 0
    %2277 = vmatprep.subr.bf16.mxu0 0
    %2278 = vmatpush1.bf16.msra.mxu0 0
    %2279 = vmatprep.subr.bf16.mxu0 0
    %2280 = vmatpush1.bf16.msra.mxu0 0
    %2281 = vmatprep.subr.bf16.mxu0 0
    %2282 = vmatpush1.bf16.msra.mxu0 0
    %2283 = vmatprep.subr.bf16.mxu0 0
    %2284 = vmatpush1.bf16.msra.mxu0 0
    %2285 = vmatprep.subr.bf16.mxu0 0
    %2286 = vmatpush1.bf16.msra.mxu0 0
    %2287 = vmatprep.subr.bf16.mxu0 0
    %2288 = vmatpush1.bf16.msra.mxu0 0
    %2289 = vmatprep.subr.bf16.mxu0 0
    %2290 = vmatpush1.bf16.msra.mxu0 0
    %2291 = vmatprep.mubr.bf16.mxu0 0
    %2292 = vmatmul.mubr.bf16.gmra.mrb[0].mxu0 %v2187
    %v2293 = vpop.f32.mrb[0].mxu0
    %v2294 = vadd.f32 %v2209, %v2293
    %v2295 = vpop.f32.mrb[0].mxu0
    %v2296 = vpop.f32.mrb[0].mxu0
    %v2297 = vpop.f32.mrb[0].mxu0
    %2298 = vdwg.mxu0
    %2299 = vst [vmem:[#allocation19] sm:$0xff] %v2294
    // Predicated region
    $region86: #{tpu_custom_call.1} parent=1 // pred_check
      _
    $region87: #{tpu_custom_call.1} parent=1 // pred_check_branch
      %2301 = sbr.rel (0) target = $region89
    $region88: #{tpu_custom_call.1} parent=1 // pred_region
      %s2303 = ssub.s32 128, 128
      %2304 = vsyncadd [#allocation4], %s2303
      %s2306 = sshll.u32 [#allocation19], 4
      %s2307 = int_to_ptr.vmem [resolvable:$true] %s2306
      %2309 = dma.vmem_to_hbm [thread:$0]  %s2307, 128, %s11, [#allocation4]
    $region89: #{tpu_custom_call.1} parent=1 // pred_fallthru
      _
    // Predicated region
    $region90: #{tpu_custom_call.1} parent=1 // pred_check
      _
    $region91: #{tpu_custom_call.1} parent=1 // pred_check_branch
      %2311 = sbr.rel (0) target = $region93
    $region92: #{tpu_custom_call.1} parent=1 // pred_region
      %2312 = dma.done [#allocation4], 128
    $region93: #{tpu_custom_call.1} parent=1 // pred_fallthru
      _
    %2313 = vsyncpa [#allocation3], 1
    %2314 = vsyncpa [#allocation6], 1
    %2315 = vsyncpa [#allocation9], 1
    %2316 = vsyncpa [#allocation12], 1
    %2317 = vsyncpa [#allocation15], 1
    %2318 = vsyncpa [#allocation18], 1
    %2319 = vsyncpa [#allocation4], 1

</llo_original>
